<compile_context>
chip_gen: v7x
topology: tpu7x:2x2x1
jax: 0.10.0
libtpu: 0.0.40
codegen_flags: <defaults>
</compile_context>

<pallas_src>
import jax
import jax.numpy as jnp
from jax.experimental import pallas as pl
from jax.experimental.pallas import tpu as pltpu

HIDDEN = 256            # mlp_dims = [256, 256]
OUT_DIM = 1
DEFAULT_BATCH_TILE = 256


def _round_up(x, m):
    return (x + m - 1) // m * m


def _flatten_pieces(x):
    """Mirror the torch module: dict -> its values (concat order), 1-D -> [1, d]."""
    if x is None:
        return []
    vals = list(x.values()) if isinstance(x, dict) else [x]
    return [v[None, :] if v.ndim == 1 else v for v in vals]


def _make_mlp_kernel(n_pieces):
    def kernel(*refs):
        xs = refs[:n_pieces]                      # each [tile, d_i], f32
        w1s = refs[n_pieces:2 * n_pieces]         # each [d_i, HIDDEN], compute dtype
        b1_ref, w2_ref, b2_ref, w3_ref, b3_ref, o_ref = refs[2 * n_pieces:]

        cdt = w2_ref.dtype                        # bf16 (default) or f32

        # ---- Layer 1: fused concat as split-K partial matmuls (MXU) ---------
        h1 = jnp.dot(xs[0][...].astype(cdt), w1s[0][...],
                     preferred_element_type=jnp.float32)
        for x_ref, w_ref in zip(xs[1:], w1s[1:]):
            h1 = h1 + jnp.dot(x_ref[...].astype(cdt), w_ref[...],
                              preferred_element_type=jnp.float32)
        h1 = jnp.tanh(h1 + b1_ref[...])           # f32 bias add + tanh (EUP)

        # ---- Layer 2 (MXU, 256x256) -----------------------------------------
        h2 = jnp.dot(h1.astype(cdt), w2_ref[...],
                     preferred_element_type=jnp.float32)
        h2 = jnp.tanh(h2 + b2_ref[...])

        # ---- Layer 3: 256 -> 1 via VPU multiply + XLU lane reduction --------
        out = jnp.sum(h2 * w3_ref[...], axis=-1, keepdims=True) + b3_ref[...]
        o_ref[...] = out.astype(o_ref.dtype)

    return kernel


def discriminator_forward(params, ob, ob_next=None, ac=None, *,
                          batch_tile=DEFAULT_BATCH_TILE,
                          compute_dtype=jnp.bfloat16):
    """Forward pass.  params = (w1, b1, w2, b2, w3, b3) with weights stored as
    [d_in, d_out] (transposed vs. torch.nn.Linear.weight) and biases [1, d_out]."""
    pieces = (_flatten_pieces(ob) + _flatten_pieces(ob_next)
              + _flatten_pieces(ac))
    pieces = [p.astype(jnp.float32) for p in pieces]
    dims = [int(p.shape[-1]) for p in pieces]
    batch = int(pieces[0].shape[0])

    w1, b1, w2, b2, w3, b3 = params
    assert w1.shape == (sum(dims), HIDDEN), "w1 rows must match concat width"

    cdt = jnp.dtype(compute_dtype)

    # Split w1's rows to match the (virtual) concat order -> no HBM concat.
    w1s, off = [], 0
    for d in dims:
        w1s.append(w1[off:off + d, :].astype(cdt))
        off += d
    w2c = w2.astype(cdt)
    b1r = b1.reshape(1, HIDDEN).astype(jnp.float32)
    b2r = b2.reshape(1, HIDDEN).astype(jnp.float32)
    w3r = w3.reshape(1, HIDDEN).astype(jnp.float32)   # row vector for the VPU path
    b3r = b3.reshape(1, OUT_DIM).astype(jnp.float32)

    # Big, sublane-aligned batch tile; pad the batch here (padded rows are
    # finite garbage and get sliced off below).
    tile = min(_round_up(batch_tile, 8), _round_up(batch, 8))
    b_pad = _round_up(batch, tile)
    xs = [jnp.pad(p, ((0, b_pad - batch), (0, 0))) for p in pieces]

    n = len(pieces)
    x_specs = [pl.BlockSpec((tile, d), lambda i: (i, 0)) for d in dims]
    const = lambda shape: pl.BlockSpec(shape, lambda i: (0, 0))
    w_specs = [const(w.shape) for w in w1s]
    misc_specs = [const(b1r.shape), const(w2c.shape), const(b2r.shape),
                  const(w3r.shape), const(b3r.shape)]

    out = pl.pallas_call(
        _make_mlp_kernel(n),
        out_shape=jax.ShapeDtypeStruct((b_pad, OUT_DIM), jnp.float32),
        grid=(b_pad // tile,),
        in_specs=x_specs + w_specs + misc_specs,
        out_specs=pl.BlockSpec((tile, OUT_DIM), lambda i: (i, 0)),
        compiler_params=pltpu.CompilerParams(
            dimension_semantics=("parallel",),
        ),
    )(*xs, *w1s, b1r, w2c, b2r, w3r, b3r)
    return out[:batch]


def init_params(key, in_dim):
    """Deterministic init matching the torch.nn.Linear shapes of the MLP."""
    ks = jax.random.split(key, 6)

    def linear(kw, kb, d_in, d_out):
        bound = 1.0 / jnp.sqrt(jnp.float32(d_in))   # torch.nn.Linear default range
        w = jax.random.uniform(kw, (d_in, d_out), jnp.float32, -bound, bound)
        b = jax.random.uniform(kb, (1, d_out), jnp.float32, -bound, bound)
        return w, b

    w1, b1 = linear(ks[0], ks[1], in_dim, HIDDEN)
    w2, b2 = linear(ks[2], ks[3], HIDDEN, HIDDEN)
    w3, b3 = linear(ks[4], ks[5], HIDDEN, OUT_DIM)
    return (w1, b1, w2, b2, w3, b3)


def _reference_forward(params, ob, ob_next=None, ac=None):
    w1, b1, w2, b2, w3, b3 = params
    pieces = (_flatten_pieces(ob) + _flatten_pieces(ob_next)
              + _flatten_pieces(ac))
    x = jnp.concatenate(pieces, axis=-1).astype(jnp.float32)
    h1 = jnp.tanh(x @ w1 + b1)
    h2 = jnp.tanh(h1 @ w2 + b2)
    return h2 @ w3 + b3


if __name__ == "__main__":
    key = jax.random.PRNGKey(0)
    k_ob, k_obn, k_ac, k_par = jax.random.split(key, 4)

    # Small flat observation / action spaces (gym flatdim of Box spaces).
    # Ragged batch (300) exercises the padding path and gives 2 grid steps
    # at the 256-row tile (so the batch-parallel / megacore path is used).
    B, OB_DIM, OBN_DIM, AC_DIM = 300, 16, 16, 8
    ob = jax.random.normal(k_ob, (B, OB_DIM), jnp.float32)
    ob_next = jax.random.normal(k_obn, (B, OBN_DIM), jnp.float32)
    ac = jax.random.normal(k_ac, (B, AC_DIM), jnp.float32)

    params = init_params(k_par, OB_DIM + OBN_DIM + AC_DIM)
    ref = _reference_forward(params, ob, ob_next, ac)

    # Exact-f32 compute path: tight check against the pure-JAX reference.
    out_f32 = jax.block_until_ready(
        discriminator_forward(params, ob, ob_next, ac,
                              compute_dtype=jnp.float32))
    assert out_f32.shape == (B, OUT_DIM)
    assert jnp.allclose(out_f32, ref, atol=1e-3, rtol=1e-3), "f32 path mismatch"

    # Default bf16-into-MXU path: looser tolerance for bf16 matmul operands.
    out_bf16 = jax.block_until_ready(
        discriminator_forward(params, ob, ob_next, ac))
    assert out_bf16.shape == (B, OUT_DIM)
    assert jnp.allclose(out_bf16, ref, atol=5e-2, rtol=5e-2), "bf16 path mismatch"

    print("KERNEL_OK")
</pallas_src>

<mosaic_0001>
module attributes {stable_mosaic.version = 11 : i64} {
  func.func @kernel(%arg0: i32, %arg1: memref<256x16xf32, #tpu.memory_space<vmem>>, %arg2: memref<256x16xf32, #tpu.memory_space<vmem>>, %arg3: memref<256x8xf32, #tpu.memory_space<vmem>>, %arg4: memref<16x256xf32, #tpu.memory_space<vmem>>, %arg5: memref<16x256xf32, #tpu.memory_space<vmem>>, %arg6: memref<8x256xf32, #tpu.memory_space<vmem>>, %arg7: memref<1x256xf32, #tpu.memory_space<vmem>>, %arg8: memref<256x256xf32, #tpu.memory_space<vmem>>, %arg9: memref<1x256xf32, #tpu.memory_space<vmem>>, %arg10: memref<1x256xf32, #tpu.memory_space<vmem>>, %arg11: memref<1x1xf32, #tpu.memory_space<vmem>>, %arg12: memref<256x1xf32, #tpu.memory_space<vmem>>) attributes {dimension_semantics = [#tpu.dimension_semantics<parallel>], iteration_bounds = array<i64: 2>, scalar_prefetch = 0 : i64, scratch_operands = 0 : i64, tpu.core_type = #tpu.core_type<tc>, window_params = [{transform_indices = @transform_0, window_bounds = array<i64: 256, 16>}, {transform_indices = @transform_1, window_bounds = array<i64: 256, 16>}, {transform_indices = @transform_2, window_bounds = array<i64: 256, 8>}, {pipeline_mode = #tpu.pipeline_mode<synchronous>, transform_indices = @transform_3, window_bounds = array<i64: 16, 256>}, {pipeline_mode = #tpu.pipeline_mode<synchronous>, transform_indices = @transform_4, window_bounds = array<i64: 16, 256>}, {pipeline_mode = #tpu.pipeline_mode<synchronous>, transform_indices = @transform_5, window_bounds = array<i64: 8, 256>}, {pipeline_mode = #tpu.pipeline_mode<synchronous>, transform_indices = @transform_6, window_bounds = array<i64: 1, 256>}, {pipeline_mode = #tpu.pipeline_mode<synchronous>, transform_indices = @transform_7, window_bounds = array<i64: 256, 256>}, {pipeline_mode = #tpu.pipeline_mode<synchronous>, transform_indices = @transform_8, window_bounds = array<i64: 1, 256>}, {pipeline_mode = #tpu.pipeline_mode<synchronous>, transform_indices = @transform_9, window_bounds = array<i64: 1, 256>}, {pipeline_mode = #tpu.pipeline_mode<synchronous>, transform_indices = @transform_10, window_bounds = array<i64: 1, 1>}, {transform_indices = @transform_11, window_bounds = array<i64: 256, 1>}]} {
    %c0 = arith.constant 0 : index
    %c0_0 = arith.constant 0 : index
    %0 = vector.load %arg1[%c0, %c0_0] : memref<256x16xf32, #tpu.memory_space<vmem>>, vector<256x16xf32>
    %c0_1 = arith.constant 0 : index
    %c0_2 = arith.constant 0 : index
    %1 = vector.load %arg4[%c0_1, %c0_2] : memref<16x256xf32, #tpu.memory_space<vmem>>, vector<16x256xf32>
    %cst = arith.constant dense<0.000000e+00> : vector<256x256xf32>
    %2 = tpu.matmul %0, %1, %cst {dimension_numbers = #tpu.dot_dimension_numbers<[1], [0], [0], [1], [0, 0, 1, 1], [], []>} : vector<256x16xf32>, vector<16x256xf32>, vector<256x256xf32> -> vector<256x256xf32>
    %c0_3 = arith.constant 0 : index
    %c0_4 = arith.constant 0 : index
    %3 = vector.load %arg2[%c0_3, %c0_4] : memref<256x16xf32, #tpu.memory_space<vmem>>, vector<256x16xf32>
    %c0_5 = arith.constant 0 : index
    %c0_6 = arith.constant 0 : index
    %4 = vector.load %arg5[%c0_5, %c0_6] : memref<16x256xf32, #tpu.memory_space<vmem>>, vector<16x256xf32>
    %cst_7 = arith.constant dense<0.000000e+00> : vector<256x256xf32>
    %5 = tpu.matmul %3, %4, %cst_7 {dimension_numbers = #tpu.dot_dimension_numbers<[1], [0], [0], [1], [0, 0, 1, 1], [], []>} : vector<256x16xf32>, vector<16x256xf32>, vector<256x256xf32> -> vector<256x256xf32>
    %6 = arith.addf %2, %5 : vector<256x256xf32>
    %c0_8 = arith.constant 0 : index
    %c0_9 = arith.constant 0 : index
    %7 = vector.load %arg3[%c0_8, %c0_9] : memref<256x8xf32, #tpu.memory_space<vmem>>, vector<256x8xf32>
    %c0_10 = arith.constant 0 : index
    %c0_11 = arith.constant 0 : index
    %8 = vector.load %arg6[%c0_10, %c0_11] : memref<8x256xf32, #tpu.memory_space<vmem>>, vector<8x256xf32>
    %cst_12 = arith.constant dense<0.000000e+00> : vector<256x256xf32>
    %9 = tpu.matmul %7, %8, %cst_12 {dimension_numbers = #tpu.dot_dimension_numbers<[1], [0], [0], [1], [0, 0, 1, 1], [], []>} : vector<256x8xf32>, vector<8x256xf32>, vector<256x256xf32> -> vector<256x256xf32>
    %10 = arith.addf %6, %9 : vector<256x256xf32>
    %c0_13 = arith.constant 0 : index
    %c0_14 = arith.constant 0 : index
    %11 = vector.load %arg7[%c0_13, %c0_14] : memref<1x256xf32, #tpu.memory_space<vmem>>, vector<1x256xf32>
    %12 = vector.broadcast %11 : vector<1x256xf32> to vector<256x256xf32>
    %13 = arith.addf %10, %12 : vector<256x256xf32>
    %14 = math.tanh %13 : vector<256x256xf32>
    %c0_15 = arith.constant 0 : index
    %c0_16 = arith.constant 0 : index
    %15 = vector.load %arg8[%c0_15, %c0_16] : memref<256x256xf32, #tpu.memory_space<vmem>>, vector<256x256xf32>
    %cst_17 = arith.constant dense<0.000000e+00> : vector<256x256xf32>
    %16 = tpu.matmul %14, %15, %cst_17 {dimension_numbers = #tpu.dot_dimension_numbers<[1], [0], [0], [1], [0, 0, 1, 1], [], []>} : vector<256x256xf32>, vector<256x256xf32>, vector<256x256xf32> -> vector<256x256xf32>
    %c0_18 = arith.constant 0 : index
    %c0_19 = arith.constant 0 : index
    %17 = vector.load %arg9[%c0_18, %c0_19] : memref<1x256xf32, #tpu.memory_space<vmem>>, vector<1x256xf32>
    %18 = vector.broadcast %17 : vector<1x256xf32> to vector<256x256xf32>
    %19 = arith.addf %16, %18 : vector<256x256xf32>
    %20 = math.tanh %19 : vector<256x256xf32>
    %c0_20 = arith.constant 0 : index
    %c0_21 = arith.constant 0 : index
    %21 = vector.load %arg10[%c0_20, %c0_21] : memref<1x256xf32, #tpu.memory_space<vmem>>, vector<1x256xf32>
    %22 = vector.broadcast %21 : vector<1x256xf32> to vector<256x256xf32>
    %23 = arith.mulf %20, %22 : vector<256x256xf32>
    %cst_22 = arith.constant dense<0.000000e+00> : vector<256xf32>
    %24 = vector.multi_reduction <add>, %23, %cst_22 [1] : vector<256x256xf32> to vector<256xf32>
    %25 = vector.shape_cast %24 : vector<256xf32> to vector<256x1xf32>
    %c0_23 = arith.constant 0 : index
    %c0_24 = arith.constant 0 : index
    %26 = vector.load %arg11[%c0_23, %c0_24] : memref<1x1xf32, #tpu.memory_space<vmem>>, vector<1x1xf32>
    %27 = vector.broadcast %26 : vector<1x1xf32> to vector<256x1xf32>
    %28 = arith.addf %25, %27 : vector<256x1xf32>
    %c0_25 = arith.constant 0 : index
    %c0_26 = arith.constant 0 : index
    %29 = vector.load %arg12[%c0_25, %c0_26] : memref<256x1xf32, #tpu.memory_space<vmem>>, vector<256x1xf32>
    tpu.vector_store %arg12[%c0_25, %c0_26], %28 {strides = array<i32>} : memref<256x1xf32, #tpu.memory_space<vmem>>, vector<256x1xf32>,
    return
  }
  func.func @transform_0(%arg0: i32) -> (i32, i32) {
    %c0_i32 = arith.constant 0 : i32
    %c0_i32_0 = arith.constant 0 : i32
    return %arg0, %c0_i32 : i32, i32
  }
  func.func @transform_1(%arg0: i32) -> (i32, i32) {
    %c0_i32 = arith.constant 0 : i32
    %c0_i32_0 = arith.constant 0 : i32
    return %arg0, %c0_i32 : i32, i32
  }
  func.func @transform_2(%arg0: i32) -> (i32, i32) {
    %c0_i32 = arith.constant 0 : i32
    %c0_i32_0 = arith.constant 0 : i32
    return %arg0, %c0_i32 : i32, i32
  }
  func.func @transform_3(%arg0: i32) -> (i32, i32) {
    %c0_i32 = arith.constant 0 : i32
    %c0_i32_0 = arith.constant 0 : i32
    %c0_i32_1 = arith.constant 0 : i32
    return %c0_i32, %c0_i32_0 : i32, i32
  }
  func.func @transform_4(%arg0: i32) -> (i32, i32) {
    %c0_i32 = arith.constant 0 : i32
    %c0_i32_0 = arith.constant 0 : i32
    %c0_i32_1 = arith.constant 0 : i32
    return %c0_i32, %c0_i32_0 : i32, i32
  }
  func.func @transform_5(%arg0: i32) -> (i32, i32) {
    %c0_i32 = arith.constant 0 : i32
    %c0_i32_0 = arith.constant 0 : i32
    %c0_i32_1 = arith.constant 0 : i32
    return %c0_i32, %c0_i32_0 : i32, i32
  }
  func.func @transform_6(%arg0: i32) -> (i32, i32) {
    %c0_i32 = arith.constant 0 : i32
    %c0_i32_0 = arith.constant 0 : i32
    %c0_i32_1 = arith.constant 0 : i32
    return %c0_i32, %c0_i32_0 : i32, i32
  }
  func.func @transform_7(%arg0: i32) -> (i32, i32) {
    %c0_i32 = arith.constant 0 : i32
    %c0_i32_0 = arith.constant 0 : i32
    %c0_i32_1 = arith.constant 0 : i32
    return %c0_i32, %c0_i32_0 : i32, i32
  }
  func.func @transform_8(%arg0: i32) -> (i32, i32) {
    %c0_i32 = arith.constant 0 : i32
    %c0_i32_0 = arith.constant 0 : i32
    %c0_i32_1 = arith.constant 0 : i32
    return %c0_i32, %c0_i32_0 : i32, i32
  }
  func.func @transform_9(%arg0: i32) -> (i32, i32) {
    %c0_i32 = arith.constant 0 : i32
    %c0_i32_0 = arith.constant 0 : i32
    %c0_i32_1 = arith.constant 0 : i32
    return %c0_i32, %c0_i32_0 : i32, i32
  }
  func.func @transform_10(%arg0: i32) -> (i32, i32) {
    %c0_i32 = arith.constant 0 : i32
    %c0_i32_0 = arith.constant 0 : i32
    %c0_i32_1 = arith.constant 0 : i32
    return %c0_i32, %c0_i32_0 : i32, i32
  }
  func.func @transform_11(%arg0: i32) -> (i32, i32) {
    %c0_i32 = arith.constant 0 : i32
    %c0_i32_0 = arith.constant 0 : i32
    return %arg0, %c0_i32 : i32, i32
  }
}

</mosaic_0001>

<llo_original>
// kernel: tpu_custom_call.1
$region0: #{tpu_custom_call.1}
  #allocation0 [shape = 'u32[]', space=smem, size = 0x4, offset = 0x4, fixed_abs, tag = 'smem constant byte address 0x4 - core index']
  #allocation1 [shape = 'u32[144,128]{1,0:T(1,128)}', space=vmem, size = 0x12000, scoped, tag = 'internal scratch']
  #allocation2 [shape = 'f32[1,1]{1,0:T(1,128)S(1)}', space=vmem, size = 0x200, scoped, tag = 'scoped memory for tpu_custom_call.1']
  %s0 = inlined_call_operand.vmem [shape: f32[512,16], index: 0, kind: input, shape index: {}]
  %s1 = inlined_call_operand.vmem [shape: f32[512,16], index: 1, kind: input, shape index: {}]
  %s2 = inlined_call_operand.vmem [shape: f32[512,8], index: 2, kind: input, shape index: {}]
  %s3 = inlined_call_operand.vmem [shape: f32[16,256], index: 3, kind: input, shape index: {}]
  %s4 = inlined_call_operand.vmem [shape: f32[16,256], index: 4, kind: input, shape index: {}]
  %s5 = inlined_call_operand.vmem [shape: f32[8,256], index: 5, kind: input, shape index: {}]
  %s6 = inlined_call_operand.vmem [shape: f32[1,256], index: 6, kind: input, shape index: {}]
  %s7 = inlined_call_operand.vmem [shape: f32[256,256], index: 7, kind: input, shape index: {}]
  %s8 = inlined_call_operand.vmem [shape: f32[1,256], index: 8, kind: input, shape index: {}]
  %s9 = inlined_call_operand.vmem [shape: f32[1,256], index: 9, kind: input, shape index: {}]
  %s10 = inlined_call_operand.<no memory space> [shape: f32[1,1], index: 10, kind: input, shape index: {}]
  %s11 = inlined_call_operand.vmem [shape: f32[512,1], index: 11, kind: output, shape index: {}]
  %s12 = sld [smem:[#allocation0]]
  $region77: #{tpu_custom_call.1} parent=0
    _
  %s14 = ssub.s32 1, %s12
  %s15 = scalar_select 0, %s14, %s12
  %v16 = vstv %s10
  %17 = vst [vmem:[#allocation2] sm:$0x1] %v16
  loop: start=0, step=1, limit=4
  $region2: #{tpu_custom_call.1} parent=0 // loop_pre_header
    _
  $region3: #{tpu_custom_call.1} parent=0 // loop_header
    %s19 = sphi 0, %s23
    %p20 = scmp.ge.s32.totalorder %s19, 4
    %s29 = sphi 0, %s31
    %s32 = sphi 0, %s29
    %s33 = sphi 0, %s32
    %s49 = sphi 0, %s33
    %s55 = sphi 0, %s57
    %s58 = sphi 0, %s55
    %s59 = sphi 0, %s58
    %s75 = sphi 0, %s59
    %s81 = sphi 0, %s83
    %s84 = sphi 0, %s81
    %s85 = sphi 0, %s84
    %s101 = sphi 0, %s85
    %s105 = sphi 0, %s105
    %s107 = sphi 0, %s105
    %s108 = sphi 0, %s107
    %s122 = sphi 0, %s108
    %s126 = sphi 0, %s126
    %s128 = sphi 0, %s126
    %s129 = sphi 0, %s128
    %s143 = sphi 0, %s129
    %s147 = sphi 0, %s147
    %s149 = sphi 0, %s147
    %s150 = sphi 0, %s149
    %s164 = sphi 0, %s150
    %s168 = sphi 0, %s168
    %s170 = sphi 0, %s168
    %s171 = sphi 0, %s170
    %s185 = sphi 0, %s171
    %s189 = sphi 0, %s189
    %s191 = sphi 0, %s189
    %s192 = sphi 0, %s191
    %s206 = sphi 0, %s192
    %s210 = sphi 0, %s210
    %s212 = sphi 0, %s210
    %s213 = sphi 0, %s212
    %s227 = sphi 0, %s213
    %s231 = sphi 0, %s231
    %s233 = sphi 0, %s231
    %s234 = sphi 0, %s233
    %s248 = sphi 0, %s234
    %s252 = sphi 0, %s252
    %s254 = sphi 0, %s252
    %s255 = sphi 0, %s254
    %s269 = sphi 0, %s255
    %s275 = sphi 0, %s277
    %s278 = sphi 0, %s275
    %s279 = sphi 0, %s278
    %s295 = sphi 0, %s279
  $region4: #{tpu_custom_call.1} parent=0 // loop_header_branch
    %22 = sbr.rel (%p20) target = $region8
  $region5: #{tpu_custom_call.1} parent=0 // loop_body
    %s24 = ssub.s32 %s19, 1
    %s25 = ssub.s32 %s19, 2
    %s26 = sadd.s32 %s19, 1
    %s27 = ssub.s32 %s19, %s26
    %p28 = scmp.eq.s32.totalorder %s27, 0
    %s30 = sadd.s32 %s29, 1
    %s31 = scalar_select %p28, %s29, %s30
    %p34 = pneg %p28
    %p35 = scmp.eq.s32.totalorder %s19, 1
    %p36 = por %p34, %p35
    %p37 = scmp.ne.s32.totalorder %s29, %s32
    %p38 = scmp.eq.s32.totalorder %s19, 0
    %p39 = por %p37, %p38
    %p40 = scmp.ne.s32.totalorder %s29, %s32
    %p41 = scmp.eq.s32.totalorder %s24, 1
    %p42 = por %p40, %p41
    %p43 = scmp.ne.s32.totalorder %s32, %s33
    %p44 = scmp.eq.s32.totalorder %s24, 0
    %p45 = por %p43, %p44
    %p46 = scmp.ne.s32.totalorder %s32, %s33
    %p47 = scmp.eq.s32.totalorder %s25, 1
    %p48 = por %p46, %p47
    %p50 = scmp.ne.s32.totalorder %s33, %s49
    %p51 = scmp.eq.s32.totalorder %s25, 0
    %p52 = por %p50, %p51
    %s53 = ssub.s32 %s19, %s26
    %p54 = scmp.eq.s32.totalorder %s53, 0
    %s56 = sadd.s32 %s55, 1
    %s57 = scalar_select %p54, %s55, %s56
    %p60 = pneg %p54
    %p61 = scmp.eq.s32.totalorder %s19, 1
    %p62 = por %p60, %p61
    %p63 = scmp.ne.s32.totalorder %s55, %s58
    %p64 = scmp.eq.s32.totalorder %s19, 0
    %p65 = por %p63, %p64
    %p66 = scmp.ne.s32.totalorder %s55, %s58
    %p67 = scmp.eq.s32.totalorder %s24, 1
    %p68 = por %p66, %p67
    %p69 = scmp.ne.s32.totalorder %s58, %s59
    %p70 = scmp.eq.s32.totalorder %s24, 0
    %p71 = por %p69, %p70
    %p72 = scmp.ne.s32.totalorder %s58, %s59
    %p73 = scmp.eq.s32.totalorder %s25, 1
    %p74 = por %p72, %p73
    %p76 = scmp.ne.s32.totalorder %s59, %s75
    %p77 = scmp.eq.s32.totalorder %s25, 0
    %p78 = por %p76, %p77
    %s79 = ssub.s32 %s19, %s26
    %p80 = scmp.eq.s32.totalorder %s79, 0
    %s82 = sadd.s32 %s81, 1
    %s83 = scalar_select %p80, %s81, %s82
    %p86 = pneg %p80
    %p87 = scmp.eq.s32.totalorder %s19, 1
    %p88 = por %p86, %p87
    %p89 = scmp.ne.s32.totalorder %s81, %s84
    %p90 = scmp.eq.s32.totalorder %s19, 0
    %p91 = por %p89, %p90
    %p92 = scmp.ne.s32.totalorder %s81, %s84
    %p93 = scmp.eq.s32.totalorder %s24, 1
    %p94 = por %p92, %p93
    %p95 = scmp.ne.s32.totalorder %s84, %s85
    %p96 = scmp.eq.s32.totalorder %s24, 0
    %p97 = por %p95, %p96
    %p98 = scmp.ne.s32.totalorder %s84, %s85
    %p99 = scmp.eq.s32.totalorder %s25, 1
    %p100 = por %p98, %p99
    %p102 = scmp.ne.s32.totalorder %s85, %s101
    %p103 = scmp.eq.s32.totalorder %s25, 0
    %p104 = por %p102, %p103
    %s106 = sadd.s32 %s105, 1
    %p109 = scmp.eq.s32.totalorder %s19, 1
    %p110 = scmp.ne.s32.totalorder %s105, %s107
    %p111 = scmp.eq.s32.totalorder %s19, 0
    %p112 = por %p110, %p111
    %p113 = scmp.ne.s32.totalorder %s105, %s107
    %p114 = scmp.eq.s32.totalorder %s24, 1
    %p115 = por %p113, %p114
    %p116 = scmp.ne.s32.totalorder %s107, %s108
    %p117 = scmp.eq.s32.totalorder %s24, 0
    %p118 = por %p116, %p117
    %p119 = scmp.ne.s32.totalorder %s107, %s108
    %p120 = scmp.eq.s32.totalorder %s25, 1
    %p121 = por %p119, %p120
    %p123 = scmp.ne.s32.totalorder %s108, %s122
    %p124 = scmp.eq.s32.totalorder %s25, 0
    %p125 = por %p123, %p124
    %s127 = sadd.s32 %s126, 1
    %p130 = scmp.eq.s32.totalorder %s19, 1
    %p131 = scmp.ne.s32.totalorder %s126, %s128
    %p132 = scmp.eq.s32.totalorder %s19, 0
    %p133 = por %p131, %p132
    %p134 = scmp.ne.s32.totalorder %s126, %s128
    %p135 = scmp.eq.s32.totalorder %s24, 1
    %p136 = por %p134, %p135
    %p137 = scmp.ne.s32.totalorder %s128, %s129
    %p138 = scmp.eq.s32.totalorder %s24, 0
    %p139 = por %p137, %p138
    %p140 = scmp.ne.s32.totalorder %s128, %s129
    %p141 = scmp.eq.s32.totalorder %s25, 1
    %p142 = por %p140, %p141
    %p144 = scmp.ne.s32.totalorder %s129, %s143
    %p145 = scmp.eq.s32.totalorder %s25, 0
    %p146 = por %p144, %p145
    %s148 = sadd.s32 %s147, 1
    %p151 = scmp.eq.s32.totalorder %s19, 1
    %p152 = scmp.ne.s32.totalorder %s147, %s149
    %p153 = scmp.eq.s32.totalorder %s19, 0
    %p154 = por %p152, %p153
    %p155 = scmp.ne.s32.totalorder %s147, %s149
    %p156 = scmp.eq.s32.totalorder %s24, 1
    %p157 = por %p155, %p156
    %p158 = scmp.ne.s32.totalorder %s149, %s150
    %p159 = scmp.eq.s32.totalorder %s24, 0
    %p160 = por %p158, %p159
    %p161 = scmp.ne.s32.totalorder %s149, %s150
    %p162 = scmp.eq.s32.totalorder %s25, 1
    %p163 = por %p161, %p162
    %p165 = scmp.ne.s32.totalorder %s150, %s164
    %p166 = scmp.eq.s32.totalorder %s25, 0
    %p167 = por %p165, %p166
    %s169 = sadd.s32 %s168, 1
    %p172 = scmp.eq.s32.totalorder %s19, 1
    %p173 = scmp.ne.s32.totalorder %s168, %s170
    %p174 = scmp.eq.s32.totalorder %s19, 0
    %p175 = por %p173, %p174
    %p176 = scmp.ne.s32.totalorder %s168, %s170
    %p177 = scmp.eq.s32.totalorder %s24, 1
    %p178 = por %p176, %p177
    %p179 = scmp.ne.s32.totalorder %s170, %s171
    %p180 = scmp.eq.s32.totalorder %s24, 0
    %p181 = por %p179, %p180
    %p182 = scmp.ne.s32.totalorder %s170, %s171
    %p183 = scmp.eq.s32.totalorder %s25, 1
    %p184 = por %p182, %p183
    %p186 = scmp.ne.s32.totalorder %s171, %s185
    %p187 = scmp.eq.s32.totalorder %s25, 0
    %p188 = por %p186, %p187
    %s190 = sadd.s32 %s189, 1
    %p193 = scmp.eq.s32.totalorder %s19, 1
    %p194 = scmp.ne.s32.totalorder %s189, %s191
    %p195 = scmp.eq.s32.totalorder %s19, 0
    %p196 = por %p194, %p195
    %p197 = scmp.ne.s32.totalorder %s189, %s191
    %p198 = scmp.eq.s32.totalorder %s24, 1
    %p199 = por %p197, %p198
    %p200 = scmp.ne.s32.totalorder %s191, %s192
    %p201 = scmp.eq.s32.totalorder %s24, 0
    %p202 = por %p200, %p201
    %p203 = scmp.ne.s32.totalorder %s191, %s192
    %p204 = scmp.eq.s32.totalorder %s25, 1
    %p205 = por %p203, %p204
    %p207 = scmp.ne.s32.totalorder %s192, %s206
    %p208 = scmp.eq.s32.totalorder %s25, 0
    %p209 = por %p207, %p208
    %s211 = sadd.s32 %s210, 1
    %p214 = scmp.eq.s32.totalorder %s19, 1
    %p215 = scmp.ne.s32.totalorder %s210, %s212
    %p216 = scmp.eq.s32.totalorder %s19, 0
    %p217 = por %p215, %p216
    %p218 = scmp.ne.s32.totalorder %s210, %s212
    %p219 = scmp.eq.s32.totalorder %s24, 1
    %p220 = por %p218, %p219
    %p221 = scmp.ne.s32.totalorder %s212, %s213
    %p222 = scmp.eq.s32.totalorder %s24, 0
    %p223 = por %p221, %p222
    %p224 = scmp.ne.s32.totalorder %s212, %s213
    %p225 = scmp.eq.s32.totalorder %s25, 1
    %p226 = por %p224, %p225
    %p228 = scmp.ne.s32.totalorder %s213, %s227
    %p229 = scmp.eq.s32.totalorder %s25, 0
    %p230 = por %p228, %p229
    %s232 = sadd.s32 %s231, 1
    %p235 = scmp.eq.s32.totalorder %s19, 1
    %p236 = scmp.ne.s32.totalorder %s231, %s233
    %p237 = scmp.eq.s32.totalorder %s19, 0
    %p238 = por %p236, %p237
    %p239 = scmp.ne.s32.totalorder %s231, %s233
    %p240 = scmp.eq.s32.totalorder %s24, 1
    %p241 = por %p239, %p240
    %p242 = scmp.ne.s32.totalorder %s233, %s234
    %p243 = scmp.eq.s32.totalorder %s24, 0
    %p244 = por %p242, %p243
    %p245 = scmp.ne.s32.totalorder %s233, %s234
    %p246 = scmp.eq.s32.totalorder %s25, 1
    %p247 = por %p245, %p246
    %p249 = scmp.ne.s32.totalorder %s234, %s248
    %p250 = scmp.eq.s32.totalorder %s25, 0
    %p251 = por %p249, %p250
    %s253 = sadd.s32 %s252, 1
    %p256 = scmp.eq.s32.totalorder %s19, 1
    %p257 = scmp.ne.s32.totalorder %s252, %s254
    %p258 = scmp.eq.s32.totalorder %s19, 0
    %p259 = por %p257, %p258
    %p260 = scmp.ne.s32.totalorder %s252, %s254
    %p261 = scmp.eq.s32.totalorder %s24, 1
    %p262 = por %p260, %p261
    %p263 = scmp.ne.s32.totalorder %s254, %s255
    %p264 = scmp.eq.s32.totalorder %s24, 0
    %p265 = por %p263, %p264
    %p266 = scmp.ne.s32.totalorder %s254, %s255
    %p267 = scmp.eq.s32.totalorder %s25, 1
    %p268 = por %p266, %p267
    %p270 = scmp.ne.s32.totalorder %s255, %s269
    %p271 = scmp.eq.s32.totalorder %s25, 0
    %p272 = por %p270, %p271
    %s273 = ssub.s32 %s19, %s26
    %p274 = scmp.eq.s32.totalorder %s273, 0
    %s276 = sadd.s32 %s275, 1
    %s277 = scalar_select %p274, %s275, %s276
    %p280 = pneg %p274
    %p281 = scmp.eq.s32.totalorder %s19, 1
    %p282 = por %p280, %p281
    %p283 = scmp.ne.s32.totalorder %s275, %s278
    %p284 = scmp.eq.s32.totalorder %s19, 0
    %p285 = por %p283, %p284
    %p286 = scmp.ne.s32.totalorder %s275, %s278
    %p287 = scmp.eq.s32.totalorder %s24, 1
    %p288 = por %p286, %p287
    %p289 = scmp.ne.s32.totalorder %s278, %s279
    %p290 = scmp.eq.s32.totalorder %s24, 0
    %p291 = por %p289, %p290
    %p292 = scmp.ne.s32.totalorder %s278, %s279
    %p293 = scmp.eq.s32.totalorder %s25, 1
    %p294 = por %p292, %p293
    %p296 = scmp.ne.s32.totalorder %s279, %s295
    %p297 = scmp.eq.s32.totalorder %s25, 0
    %p298 = por %p296, %p297
    %p299 = scmp.le.s32.totalorder 1, %s19
    %p300 = scmp.lt.s32.totalorder %s19, 3
    %p301 = pnand %p299, %p300
    %p302 = pneg %p301
    // Predicated region
    $region9: #{tpu_custom_call.1} parent=5 // pred_check
      _
    $region10: #{tpu_custom_call.1} parent=5 // pred_check_branch
      %304 = sbr.rel (%p301) target = $region12
    $region11: #{tpu_custom_call.1} parent=5 // pred_region
      %s305 = ssub.s32 %s19, 1
      // Predicated region
      $region13: #{tpu_custom_call.1} parent=11 // pred_check
        %p306 = pneg %p118
      $region14: #{tpu_custom_call.1} parent=11 // pred_check_branch
        %308 = sbr.rel (%p306) target = $region16
      $region15: #{tpu_custom_call.1} parent=11 // pred_region
        _
      $region16: #{tpu_custom_call.1} parent=11 // pred_fallthru
        _
      // Predicated region
      $region17: #{tpu_custom_call.1} parent=11 // pred_check
        %p309 = pneg %p139
      $region18: #{tpu_custom_call.1} parent=11 // pred_check_branch
        %311 = sbr.rel (%p309) target = $region20
      $region19: #{tpu_custom_call.1} parent=11 // pred_region
        _
      $region20: #{tpu_custom_call.1} parent=11 // pred_fallthru
        _
      // Predicated region
      $region21: #{tpu_custom_call.1} parent=11 // pred_check
        %p312 = pneg %p160
      $region22: #{tpu_custom_call.1} parent=11 // pred_check_branch
        %314 = sbr.rel (%p312) target = $region24
      $region23: #{tpu_custom_call.1} parent=11 // pred_region
        _
      $region24: #{tpu_custom_call.1} parent=11 // pred_fallthru
        _
      // Predicated region
      $region25: #{tpu_custom_call.1} parent=11 // pred_check
        %p315 = pneg %p181
      $region26: #{tpu_custom_call.1} parent=11 // pred_check_branch
        %317 = sbr.rel (%p315) target = $region28
      $region27: #{tpu_custom_call.1} parent=11 // pred_region
        _
      $region28: #{tpu_custom_call.1} parent=11 // pred_fallthru
        _
      // Predicated region
      $region29: #{tpu_custom_call.1} parent=11 // pred_check
        %p318 = pneg %p202
      $region30: #{tpu_custom_call.1} parent=11 // pred_check_branch
        %320 = sbr.rel (%p318) target = $region32
      $region31: #{tpu_custom_call.1} parent=11 // pred_region
        _
      $region32: #{tpu_custom_call.1} parent=11 // pred_fallthru
        _
      // Predicated region
      $region33: #{tpu_custom_call.1} parent=11 // pred_check
        %p321 = pneg %p223
      $region34: #{tpu_custom_call.1} parent=11 // pred_check_branch
        %323 = sbr.rel (%p321) target = $region36
      $region35: #{tpu_custom_call.1} parent=11 // pred_region
        _
      $region36: #{tpu_custom_call.1} parent=11 // pred_fallthru
        _
      // Predicated region
      $region37: #{tpu_custom_call.1} parent=11 // pred_check
        %p324 = pneg %p244
      $region38: #{tpu_custom_call.1} parent=11 // pred_check_branch
        %326 = sbr.rel (%p324) target = $region40
      $region39: #{tpu_custom_call.1} parent=11 // pred_region
        _
      $region40: #{tpu_custom_call.1} parent=11 // pred_fallthru
        _
      // Predicated region
      $region41: #{tpu_custom_call.1} parent=11 // pred_check
        %p327 = pneg %p265
      $region42: #{tpu_custom_call.1} parent=11 // pred_check_branch
        %329 = sbr.rel (%p327) target = $region44
      $region43: #{tpu_custom_call.1} parent=11 // pred_region
        _
      $region44: #{tpu_custom_call.1} parent=11 // pred_fallthru
        _
    $region12: #{tpu_custom_call.1} parent=5 // pred_fallthru
      _
    %p330 = scmp.lt.s32.totalorder %s19, 2
    // Predicated region
    $region45: #{tpu_custom_call.1} parent=5 // pred_check
      %p331 = pneg %p330
    $region46: #{tpu_custom_call.1} parent=5 // pred_check_branch
      %333 = sbr.rel (%p331) target = $region48
    $region47: #{tpu_custom_call.1} parent=5 // pred_region
      // Predicated region
      $region49: #{tpu_custom_call.1} parent=47 // pred_check
        %p334 = pneg %p39
      $region50: #{tpu_custom_call.1} parent=47 // pred_check_branch
        %336 = sbr.rel (%p334) target = $region52
      $region51: #{tpu_custom_call.1} parent=47 // pred_region
        %s337 = smul.u32 32, %s19
        %p338 = scmp.lt.s32.totalorder %s337, 63
        %s339 = scalar_select %p338, %s337, 63
        %s340 = smul.addr %s339, 8
        %s341 = scalar_lea.vmem %s0, %s340
        %s342 = smul.u32 32, %s19
      $region52: #{tpu_custom_call.1} parent=47 // pred_fallthru
        _
      // Predicated region
      $region53: #{tpu_custom_call.1} parent=47 // pred_check
        %p343 = pneg %p65
      $region54: #{tpu_custom_call.1} parent=47 // pred_check_branch
        %345 = sbr.rel (%p343) target = $region56
      $region55: #{tpu_custom_call.1} parent=47 // pred_region
        %s346 = smul.u32 32, %s19
        %p347 = scmp.lt.s32.totalorder %s346, 63
        %s348 = scalar_select %p347, %s346, 63
        %s349 = smul.addr %s348, 8
        %s350 = scalar_lea.vmem %s1, %s349
        %s351 = smul.u32 32, %s19
      $region56: #{tpu_custom_call.1} parent=47 // pred_fallthru
        _
      // Predicated region
      $region57: #{tpu_custom_call.1} parent=47 // pred_check
        %p352 = pneg %p91
      $region58: #{tpu_custom_call.1} parent=47 // pred_check_branch
        %354 = sbr.rel (%p352) target = $region60
      $region59: #{tpu_custom_call.1} parent=47 // pred_region
        %s355 = smul.u32 32, %s19
        %p356 = scmp.lt.s32.totalorder %s355, 63
        %s357 = scalar_select %p356, %s355, 63
        %s358 = smul.addr %s357, 8
        %s359 = scalar_lea.vmem %s2, %s358
        %s360 = smul.u32 32, %s19
      $region60: #{tpu_custom_call.1} parent=47 // pred_fallthru
        _
    $region48: #{tpu_custom_call.1} parent=5 // pred_fallthru
      _
    %p361 = scmp.le.s32.totalorder 1, %s19
    %p362 = scmp.lt.s32.totalorder %s19, 3
    %p363 = pnand %p361, %p362
    %p364 = pneg %p363
    // Predicated region
    $region61: #{tpu_custom_call.1} parent=5 // pred_check
      _
    $region62: #{tpu_custom_call.1} parent=5 // pred_check_branch
      %366 = sbr.rel (%p363) target = $region64
    $region63: #{tpu_custom_call.1} parent=5 // pred_region
      %s367 = ssub.s32 %s19, 1
      %s368 = smul.u32 32, %s24
      %p369 = scmp.lt.s32.totalorder %s368, 63
      %s370 = scalar_select %p369, %s368, 63
      %s371 = smul.addr %s370, 8
      %s372 = scalar_lea.vmem %s0, %s371
      %p373 = pneg %p45
      %p374 = pneg %p42
      %s375 = smul.u32 32, %s24
      %p376 = scmp.lt.s32.totalorder %s375, 63
      %s377 = scalar_select %p376, %s375, 63
      %s378 = smul.addr %s377, 8
      %s379 = scalar_lea.vmem %s1, %s378
      %p380 = pneg %p71
      %p381 = pneg %p68
      %s382 = smul.u32 32, %s24
      %p383 = scmp.lt.s32.totalorder %s382, 63
      %s384 = scalar_select %p383, %s382, 63
      %s385 = smul.addr %s384, 8
      %s386 = scalar_lea.vmem %s2, %s385
      %p387 = pneg %p97
      %p388 = pneg %p94
      %p389 = pneg %p118
      %p390 = pneg %p115
      %p391 = pneg %p139
      %p392 = pneg %p136
      %p393 = pneg %p160
      %p394 = pneg %p157
      %p395 = pneg %p181
      %p396 = pneg %p178
      %p397 = pneg %p202
      %p398 = pneg %p199
      %p399 = pneg %p223
      %p400 = pneg %p220
      %p401 = pneg %p244
      %p402 = pneg %p241
      %p403 = pneg %p265
      %p404 = pneg %p262
      %p405 = pneg %p291
      %p406 = pneg %p288
      %s407 = smul.u32 32, %s24
      %p408 = scmp.lt.s32.totalorder %s407, 63
      %s409 = scalar_select %p408, %s407, 63
      %s410 = smul.addr %s409, 8
      %s411 = scalar_lea.vmem %s11, %s410
      %s412 = smul.u32 32, %s24
      %p413 = scmp.lt.s32.totalorder %s412, 63
      %s414 = scalar_select %p413, %s412, 63
      %s415 = smul.addr %s414, 8
      %s416 = scalar_lea.vmem %s0, %s415
      %s417 = smul.u32 32, %s24
      %s418 = smul.u32 32, %s24
      %p419 = scmp.lt.s32.totalorder %s418, 63
      %s420 = scalar_select %p419, %s418, 63
      %s421 = smul.addr %s420, 8
      %s422 = scalar_lea.vmem %s1, %s421
      %s423 = smul.u32 32, %s24
      %s424 = smul.u32 32, %s24
      %p425 = scmp.lt.s32.totalorder %s424, 63
      %s426 = scalar_select %p425, %s424, 63
      %s427 = smul.addr %s426, 8
      %s428 = scalar_lea.vmem %s2, %s427
      %s429 = smul.u32 32, %s24
      %s430 = smul.u32 32, %s24
      %p431 = scmp.lt.s32.totalorder %s430, 63
      %s432 = scalar_select %p431, %s430, 63
      %s433 = smul.addr %s432, 8
      %s434 = scalar_lea.vmem %s11, %s433
      %s435 = smul.u32 32, %s24
      %v436 = vld [vmem:[%s416] sm:$0xff]
      %v437 = vld [vmem:[%s416 + $0x8] sm:$0xff]
      %v438 = vld [vmem:[%s416 + $0x10] sm:$0xff]
      %v439 = vld [vmem:[%s416 + $0x18] sm:$0xff]
      %v440 = vld [vmem:[%s416 + $0x20] sm:$0xff]
      %v441 = vld [vmem:[%s416 + $0x28] sm:$0xff]
      %v442 = vld [vmem:[%s416 + $0x30] sm:$0xff]
      %v443 = vld [vmem:[%s416 + $0x38] sm:$0xff]
      %v444 = vld [vmem:[%s416 + $0x40] sm:$0xff]
      %v445 = vld [vmem:[%s416 + $0x48] sm:$0xff]
      %v446 = vld [vmem:[%s416 + $0x50] sm:$0xff]
      %v447 = vld [vmem:[%s416 + $0x58] sm:$0xff]
      %v448 = vld [vmem:[%s416 + $0x60] sm:$0xff]
      %v449 = vld [vmem:[%s416 + $0x68] sm:$0xff]
      %v450 = vld [vmem:[%s416 + $0x70] sm:$0xff]
      %v451 = vld [vmem:[%s416 + $0x78] sm:$0xff]
      %v452 = vld [vmem:[%s416 + $0x80] sm:$0xff]
      %v453 = vld [vmem:[%s416 + $0x88] sm:$0xff]
      %v454 = vld [vmem:[%s416 + $0x90] sm:$0xff]
      %v455 = vld [vmem:[%s416 + $0x98] sm:$0xff]
      %v456 = vld [vmem:[%s416 + $0xa0] sm:$0xff]
      %v457 = vld [vmem:[%s416 + $0xa8] sm:$0xff]
      %v458 = vld [vmem:[%s416 + $0xb0] sm:$0xff]
      %v459 = vld [vmem:[%s416 + $0xb8] sm:$0xff]
      %v460 = vld [vmem:[%s416 + $0xc0] sm:$0xff]
      %v461 = vld [vmem:[%s416 + $0xc8] sm:$0xff]
      %v462 = vld [vmem:[%s416 + $0xd0] sm:$0xff]
      %v463 = vld [vmem:[%s416 + $0xd8] sm:$0xff]
      %v464 = vld [vmem:[%s416 + $0xe0] sm:$0xff]
      %v465 = vld [vmem:[%s416 + $0xe8] sm:$0xff]
      %v466 = vld [vmem:[%s416 + $0xf0] sm:$0xff]
      %v467 = vld [vmem:[%s416 + $0xf8] sm:$0xff]
      %v468 = vld [vmem:[%s3] sm:$0xff]
      %v469 = vld [vmem:[%s3 + $0x8] sm:$0xff]
      %v470 = vld [vmem:[%s3 + $0x10] sm:$0xff]
      %v471 = vld [vmem:[%s3 + $0x18] sm:$0xff]
      %v472 = vld [vmem:[%s422] sm:$0xff]
      %v473 = vld [vmem:[%s422 + $0x8] sm:$0xff]
      %v474 = vld [vmem:[%s422 + $0x10] sm:$0xff]
      %v475 = vld [vmem:[%s422 + $0x18] sm:$0xff]
      %v476 = vld [vmem:[%s422 + $0x20] sm:$0xff]
      %v477 = vld [vmem:[%s422 + $0x28] sm:$0xff]
      %v478 = vld [vmem:[%s422 + $0x30] sm:$0xff]
      %v479 = vld [vmem:[%s422 + $0x38] sm:$0xff]
      %v480 = vld [vmem:[%s422 + $0x40] sm:$0xff]
      %v481 = vld [vmem:[%s422 + $0x48] sm:$0xff]
      %v482 = vld [vmem:[%s422 + $0x50] sm:$0xff]
      %v483 = vld [vmem:[%s422 + $0x58] sm:$0xff]
      %v484 = vld [vmem:[%s422 + $0x60] sm:$0xff]
      %v485 = vld [vmem:[%s422 + $0x68] sm:$0xff]
      %v486 = vld [vmem:[%s422 + $0x70] sm:$0xff]
      %v487 = vld [vmem:[%s422 + $0x78] sm:$0xff]
      %v488 = vld [vmem:[%s422 + $0x80] sm:$0xff]
      %v489 = vld [vmem:[%s422 + $0x88] sm:$0xff]
      %v490 = vld [vmem:[%s422 + $0x90] sm:$0xff]
      %v491 = vld [vmem:[%s422 + $0x98] sm:$0xff]
      %v492 = vld [vmem:[%s422 + $0xa0] sm:$0xff]
      %v493 = vld [vmem:[%s422 + $0xa8] sm:$0xff]
      %v494 = vld [vmem:[%s422 + $0xb0] sm:$0xff]
      %v495 = vld [vmem:[%s422 + $0xb8] sm:$0xff]
      %v496 = vld [vmem:[%s422 + $0xc0] sm:$0xff]
      %v497 = vld [vmem:[%s422 + $0xc8] sm:$0xff]
      %v498 = vld [vmem:[%s422 + $0xd0] sm:$0xff]
      %v499 = vld [vmem:[%s422 + $0xd8] sm:$0xff]
      %v500 = vld [vmem:[%s422 + $0xe0] sm:$0xff]
      %v501 = vld [vmem:[%s422 + $0xe8] sm:$0xff]
      %v502 = vld [vmem:[%s422 + $0xf0] sm:$0xff]
      %v503 = vld [vmem:[%s422 + $0xf8] sm:$0xff]
      %v504 = vld [vmem:[%s4] sm:$0xff]
      %v505 = vld [vmem:[%s4 + $0x8] sm:$0xff]
      %v506 = vld [vmem:[%s4 + $0x10] sm:$0xff]
      %v507 = vld [vmem:[%s4 + $0x18] sm:$0xff]
      %vm508 = vcmask 130048
      %v510 = vsel %vm508, %v472, 0
      %v513 = vsel %vm508, %v473, 0
      %v516 = vsel %vm508, %v474, 0
      %v519 = vsel %vm508, %v475, 0
      %v522 = vsel %vm508, %v476, 0
      %v525 = vsel %vm508, %v477, 0
      %v528 = vsel %vm508, %v478, 0
      %v531 = vsel %vm508, %v479, 0
      %v534 = vsel %vm508, %v480, 0
      %v537 = vsel %vm508, %v481, 0
      %v540 = vsel %vm508, %v482, 0
      %v543 = vsel %vm508, %v483, 0
      %v546 = vsel %vm508, %v484, 0
      %v549 = vsel %vm508, %v485, 0
      %v552 = vsel %vm508, %v486, 0
      %v555 = vsel %vm508, %v487, 0
      %v558 = vsel %vm508, %v488, 0
      %v561 = vsel %vm508, %v489, 0
      %v564 = vsel %vm508, %v490, 0
      %v567 = vsel %vm508, %v491, 0
      %v570 = vsel %vm508, %v492, 0
      %v573 = vsel %vm508, %v493, 0
      %v576 = vsel %vm508, %v494, 0
      %v579 = vsel %vm508, %v495, 0
      %v582 = vsel %vm508, %v496, 0
      %v585 = vsel %vm508, %v497, 0
      %v588 = vsel %vm508, %v498, 0
      %v591 = vsel %vm508, %v499, 0
      %v594 = vsel %vm508, %v500, 0
      %v597 = vsel %vm508, %v501, 0
      %v600 = vsel %vm508, %v502, 0
      %v603 = vsel %vm508, %v503, 0
      %605 = vmatprep.subr.mxu0 %v505
      %606 = vmatpush1.msra.mxu0 %v504
      %607 = vmatprep.subr.mxu0 %v507
      %608 = vmatpush1.msra.mxu0 %v506
      %609 = vmatprep.subr.mxu0 0.0
      %610 = vmatpush1.msra.mxu0 0.0
      %611 = vmatprep.subr.mxu0 0.0
      %612 = vmatpush1.msra.mxu0 0.0
      %613 = vmatprep.subr.mxu0 0.0
      %614 = vmatpush1.msra.mxu0 0.0
      %615 = vmatprep.subr.mxu0 0.0
      %616 = vmatpush1.msra.mxu0 0.0
      %617 = vmatprep.subr.mxu0 0.0
      %618 = vmatpush1.msra.mxu0 0.0
      %619 = vmatprep.subr.mxu0 0.0
      %620 = vmatpush1.msra.mxu0 0.0
      %621 = vmatprep.subr.mxu0 0.0
      %622 = vmatpush1.msra.mxu0 0.0
      %623 = vmatprep.subr.mxu0 0.0
      %624 = vmatpush1.msra.mxu0 0.0
      %625 = vmatprep.subr.mxu0 0.0
      %626 = vmatpush1.msra.mxu0 0.0
      %627 = vmatprep.subr.mxu0 0.0
      %628 = vmatpush1.msra.mxu0 0.0
      %629 = vmatprep.subr.mxu0 0.0
      %630 = vmatpush1.msra.mxu0 0.0
      %631 = vmatprep.subr.mxu0 0.0
      %632 = vmatpush1.msra.mxu0 0.0
      %633 = vmatprep.subr.mxu0 0.0
      %634 = vmatpush1.msra.mxu0 0.0
      %635 = vmatprep.subr.mxu0 0.0
      %636 = vmatpush1.msra.mxu0 0.0
      %637 = vmatprep.subr.mxu0 0.0
      %638 = vmatpush1.msra.mxu0 0.0
      %639 = vmatprep.subr.mxu0 0.0
      %640 = vmatpush1.msra.mxu0 0.0
      %641 = vmatprep.subr.mxu0 0.0
      %642 = vmatpush1.msra.mxu0 0.0
      %643 = vmatprep.subr.mxu0 0.0
      %644 = vmatpush1.msra.mxu0 0.0
      %645 = vmatprep.subr.mxu0 0.0
      %646 = vmatpush1.msra.mxu0 0.0
      %647 = vmatprep.subr.mxu0 0.0
      %648 = vmatpush1.msra.mxu0 0.0
      %649 = vmatprep.subr.mxu0 0.0
      %650 = vmatpush1.msra.mxu0 0.0
      %651 = vmatprep.subr.mxu0 0.0
      %652 = vmatpush1.msra.mxu0 0.0
      %653 = vmatprep.subr.mxu0 0.0
      %654 = vmatpush1.msra.mxu0 0.0
      %655 = vmatprep.subr.mxu0 0.0
      %656 = vmatpush1.msra.mxu0 0.0
      %657 = vmatprep.subr.mxu0 0.0
      %658 = vmatpush1.msra.mxu0 0.0
      %659 = vmatprep.subr.mxu0 0.0
      %660 = vmatpush1.msra.mxu0 0.0
      %661 = vmatprep.subr.mxu0 0.0
      %662 = vmatpush1.msra.mxu0 0.0
      %663 = vmatprep.subr.mxu0 0.0
      %664 = vmatpush1.msra.mxu0 0.0
      %665 = vmatprep.subr.mxu0 0.0
      %666 = vmatpush1.msra.mxu0 0.0
      %667 = vmatprep.subr.mxu0 0.0
      %668 = vmatpush1.msra.mxu0 0.0
      %669 = vmatprep.mubr.f32.mxu0 0.0
      %670 = vmatmul.mubr.f32.gmra.mrb[0].mxu0 %v510
      %v671 = vpop.f32.mrb[0].mxu0
      %v672 = vadd.f32 0.0, %v671
      %v673 = vpop.f32.mrb[0].mxu0
      %v674 = vadd.f32 0.0, %v673
      %675 = vmatprep.mubr.f32.mxu0 0.0
      %676 = vmatmul.mubr.f32.gmra.mrb[0].mxu0 %v513
      %v677 = vpop.f32.mrb[0].mxu0
      %v678 = vadd.f32 0.0, %v677
      %v679 = vpop.f32.mrb[0].mxu0
      %v680 = vadd.f32 0.0, %v679
      %681 = vmatprep.mubr.f32.mxu0 0.0
      %682 = vmatmul.mubr.f32.gmra.mrb[0].mxu0 %v516
      %v683 = vpop.f32.mrb[0].mxu0
      %v684 = vadd.f32 0.0, %v683
      %v685 = vpop.f32.mrb[0].mxu0
      %v686 = vadd.f32 0.0, %v685
      %687 = vmatprep.mubr.f32.mxu0 0.0
      %688 = vmatmul.mubr.f32.gmra.mrb[0].mxu0 %v519
      %v689 = vpop.f32.mrb[0].mxu0
      %v690 = vadd.f32 0.0, %v689
      %v691 = vpop.f32.mrb[0].mxu0
      %v692 = vadd.f32 0.0, %v691
      %693 = vmatprep.mubr.f32.mxu0 0.0
      %694 = vmatmul.mubr.f32.gmra.mrb[0].mxu0 %v522
      %v695 = vpop.f32.mrb[0].mxu0
      %v696 = vadd.f32 0.0, %v695
      %v697 = vpop.f32.mrb[0].mxu0
      %v698 = vadd.f32 0.0, %v697
      %699 = vmatprep.mubr.f32.mxu0 0.0
      %700 = vmatmul.mubr.f32.gmra.mrb[0].mxu0 %v525
      %v701 = vpop.f32.mrb[0].mxu0
      %v702 = vadd.f32 0.0, %v701
      %v703 = vpop.f32.mrb[0].mxu0
      %v704 = vadd.f32 0.0, %v703
      %705 = vmatprep.mubr.f32.mxu0 0.0
      %706 = vmatmul.mubr.f32.gmra.mrb[0].mxu0 %v528
      %v707 = vpop.f32.mrb[0].mxu0
      %v708 = vadd.f32 0.0, %v707
      %v709 = vpop.f32.mrb[0].mxu0
      %v710 = vadd.f32 0.0, %v709
      %711 = vmatprep.mubr.f32.mxu0 0.0
      %712 = vmatmul.mubr.f32.gmra.mrb[0].mxu0 %v531
      %v713 = vpop.f32.mrb[0].mxu0
      %v714 = vadd.f32 0.0, %v713
      %v715 = vpop.f32.mrb[0].mxu0
      %v716 = vadd.f32 0.0, %v715
      %717 = vmatprep.mubr.f32.mxu0 0.0
      %718 = vmatmul.mubr.f32.gmra.mrb[0].mxu0 %v534
      %v719 = vpop.f32.mrb[0].mxu0
      %v720 = vadd.f32 0.0, %v719
      %v721 = vpop.f32.mrb[0].mxu0
      %v722 = vadd.f32 0.0, %v721
      %723 = vmatprep.mubr.f32.mxu0 0.0
      %724 = vmatmul.mubr.f32.gmra.mrb[0].mxu0 %v537
      %v725 = vpop.f32.mrb[0].mxu0
      %v726 = vadd.f32 0.0, %v725
      %v727 = vpop.f32.mrb[0].mxu0
      %v728 = vadd.f32 0.0, %v727
      %729 = vmatprep.mubr.f32.mxu0 0.0
      %730 = vmatmul.mubr.f32.gmra.mrb[0].mxu0 %v540
      %v731 = vpop.f32.mrb[0].mxu0
      %v732 = vadd.f32 0.0, %v731
      %v733 = vpop.f32.mrb[0].mxu0
      %v734 = vadd.f32 0.0, %v733
      %735 = vmatprep.mubr.f32.mxu0 0.0
      %736 = vmatmul.mubr.f32.gmra.mrb[0].mxu0 %v543
      %v737 = vpop.f32.mrb[0].mxu0
      %v738 = vadd.f32 0.0, %v737
      %v739 = vpop.f32.mrb[0].mxu0
      %v740 = vadd.f32 0.0, %v739
      %741 = vmatprep.mubr.f32.mxu0 0.0
      %742 = vmatmul.mubr.f32.gmra.mrb[0].mxu0 %v546
      %v743 = vpop.f32.mrb[0].mxu0
      %v744 = vadd.f32 0.0, %v743
      %v745 = vpop.f32.mrb[0].mxu0
      %v746 = vadd.f32 0.0, %v745
      %747 = vmatprep.mubr.f32.mxu0 0.0
      %748 = vmatmul.mubr.f32.gmra.mrb[0].mxu0 %v549
      %v749 = vpop.f32.mrb[0].mxu0
      %v750 = vadd.f32 0.0, %v749
      %v751 = vpop.f32.mrb[0].mxu0
      %v752 = vadd.f32 0.0, %v751
      %753 = vmatprep.mubr.f32.mxu0 0.0
      %754 = vmatmul.mubr.f32.gmra.mrb[0].mxu0 %v552
      %v755 = vpop.f32.mrb[0].mxu0
      %v756 = vadd.f32 0.0, %v755
      %v757 = vpop.f32.mrb[0].mxu0
      %v758 = vadd.f32 0.0, %v757
      %759 = vmatprep.mubr.f32.mxu0 0.0
      %760 = vmatmul.mubr.f32.gmra.mrb[0].mxu0 %v555
      %v761 = vpop.f32.mrb[0].mxu0
      %v762 = vadd.f32 0.0, %v761
      %v763 = vpop.f32.mrb[0].mxu0
      %v764 = vadd.f32 0.0, %v763
      %765 = vmatprep.mubr.f32.mxu0 0.0
      %766 = vmatmul.mubr.f32.gmra.mrb[0].mxu0 %v558
      %v767 = vpop.f32.mrb[0].mxu0
      %v768 = vadd.f32 0.0, %v767
      %v769 = vpop.f32.mrb[0].mxu0
      %v770 = vadd.f32 0.0, %v769
      %771 = vmatprep.mubr.f32.mxu0 0.0
      %772 = vmatmul.mubr.f32.gmra.mrb[0].mxu0 %v561
      %v773 = vpop.f32.mrb[0].mxu0
      %v774 = vadd.f32 0.0, %v773
      %v775 = vpop.f32.mrb[0].mxu0
      %v776 = vadd.f32 0.0, %v775
      %777 = vmatprep.mubr.f32.mxu0 0.0
      %778 = vmatmul.mubr.f32.gmra.mrb[0].mxu0 %v564
      %v779 = vpop.f32.mrb[0].mxu0
      %v780 = vadd.f32 0.0, %v779
      %v781 = vpop.f32.mrb[0].mxu0
      %v782 = vadd.f32 0.0, %v781
      %783 = vmatprep.mubr.f32.mxu0 0.0
      %784 = vmatmul.mubr.f32.gmra.mrb[0].mxu0 %v567
      %v785 = vpop.f32.mrb[0].mxu0
      %v786 = vadd.f32 0.0, %v785
      %v787 = vpop.f32.mrb[0].mxu0
      %v788 = vadd.f32 0.0, %v787
      %789 = vmatprep.mubr.f32.mxu0 0.0
      %790 = vmatmul.mubr.f32.gmra.mrb[0].mxu0 %v570
      %v791 = vpop.f32.mrb[0].mxu0
      %v792 = vadd.f32 0.0, %v791
      %v793 = vpop.f32.mrb[0].mxu0
      %v794 = vadd.f32 0.0, %v793
      %795 = vmatprep.mubr.f32.mxu0 0.0
      %796 = vmatmul.mubr.f32.gmra.mrb[0].mxu0 %v573
      %v797 = vpop.f32.mrb[0].mxu0
      %v798 = vadd.f32 0.0, %v797
      %v799 = vpop.f32.mrb[0].mxu0
      %v800 = vadd.f32 0.0, %v799
      %801 = vmatprep.mubr.f32.mxu0 0.0
      %802 = vmatmul.mubr.f32.gmra.mrb[0].mxu0 %v576
      %v803 = vpop.f32.mrb[0].mxu0
      %v804 = vadd.f32 0.0, %v803
      %v805 = vpop.f32.mrb[0].mxu0
      %v806 = vadd.f32 0.0, %v805
      %807 = vmatprep.mubr.f32.mxu0 0.0
      %808 = vmatmul.mubr.f32.gmra.mrb[0].mxu0 %v579
      %v809 = vpop.f32.mrb[0].mxu0
      %v810 = vadd.f32 0.0, %v809
      %v811 = vpop.f32.mrb[0].mxu0
      %v812 = vadd.f32 0.0, %v811
      %813 = vmatprep.mubr.f32.mxu0 0.0
      %814 = vmatmul.mubr.f32.gmra.mrb[0].mxu0 %v582
      %v815 = vpop.f32.mrb[0].mxu0
      %v816 = vadd.f32 0.0, %v815
      %v817 = vpop.f32.mrb[0].mxu0
      %v818 = vadd.f32 0.0, %v817
      %819 = vmatprep.mubr.f32.mxu0 0.0
      %820 = vmatmul.mubr.f32.gmra.mrb[0].mxu0 %v585
      %v821 = vpop.f32.mrb[0].mxu0
      %v822 = vadd.f32 0.0, %v821
      %v823 = vpop.f32.mrb[0].mxu0
      %v824 = vadd.f32 0.0, %v823
      %825 = vmatprep.mubr.f32.mxu0 0.0
      %826 = vmatmul.mubr.f32.gmra.mrb[0].mxu0 %v588
      %v827 = vpop.f32.mrb[0].mxu0
      %v828 = vadd.f32 0.0, %v827
      %v829 = vpop.f32.mrb[0].mxu0
      %v830 = vadd.f32 0.0, %v829
      %831 = vmatprep.mubr.f32.mxu0 0.0
      %832 = vmatmul.mubr.f32.gmra.mrb[0].mxu0 %v591
      %v833 = vpop.f32.mrb[0].mxu0
      %v834 = vadd.f32 0.0, %v833
      %v835 = vpop.f32.mrb[0].mxu0
      %v836 = vadd.f32 0.0, %v835
      %837 = vmatprep.mubr.f32.mxu0 0.0
      %838 = vmatmul.mubr.f32.gmra.mrb[0].mxu0 %v594
      %v839 = vpop.f32.mrb[0].mxu0
      %v840 = vadd.f32 0.0, %v839
      %v841 = vpop.f32.mrb[0].mxu0
      %v842 = vadd.f32 0.0, %v841
      %843 = vmatprep.mubr.f32.mxu0 0.0
      %844 = vmatmul.mubr.f32.gmra.mrb[0].mxu0 %v597
      %v845 = vpop.f32.mrb[0].mxu0
      %v846 = vadd.f32 0.0, %v845
      %v847 = vpop.f32.mrb[0].mxu0
      %v848 = vadd.f32 0.0, %v847
      %849 = vmatprep.mubr.f32.mxu0 0.0
      %850 = vmatmul.mubr.f32.gmra.mrb[0].mxu0 %v600
      %v851 = vpop.f32.mrb[0].mxu0
      %v852 = vadd.f32 0.0, %v851
      %v853 = vpop.f32.mrb[0].mxu0
      %v854 = vadd.f32 0.0, %v853
      %855 = vmatprep.mubr.f32.mxu0 0.0
      %856 = vmatmul.mubr.f32.gmra.mrb[0].mxu0 %v603
      %v857 = vpop.f32.mrb[0].mxu0
      %v858 = vadd.f32 0.0, %v857
      %v859 = vpop.f32.mrb[0].mxu0
      %v860 = vadd.f32 0.0, %v859
      %861 = vdwg.mxu0
      %v863 = vsel %vm508, %v436, 0
      %v866 = vsel %vm508, %v437, 0
      %v869 = vsel %vm508, %v438, 0
      %v872 = vsel %vm508, %v439, 0
      %v875 = vsel %vm508, %v440, 0
      %v878 = vsel %vm508, %v441, 0
      %v881 = vsel %vm508, %v442, 0
      %v884 = vsel %vm508, %v443, 0
      %v887 = vsel %vm508, %v444, 0
      %v890 = vsel %vm508, %v445, 0
      %v893 = vsel %vm508, %v446, 0
      %v896 = vsel %vm508, %v447, 0
      %v899 = vsel %vm508, %v448, 0
      %v902 = vsel %vm508, %v449, 0
      %v905 = vsel %vm508, %v450, 0
      %v908 = vsel %vm508, %v451, 0
      %v911 = vsel %vm508, %v452, 0
      %v914 = vsel %vm508, %v453, 0
      %v917 = vsel %vm508, %v454, 0
      %v920 = vsel %vm508, %v455, 0
      %v923 = vsel %vm508, %v456, 0
      %v926 = vsel %vm508, %v457, 0
      %v929 = vsel %vm508, %v458, 0
      %v932 = vsel %vm508, %v459, 0
      %v935 = vsel %vm508, %v460, 0
      %v938 = vsel %vm508, %v461, 0
      %v941 = vsel %vm508, %v462, 0
      %v944 = vsel %vm508, %v463, 0
      %v947 = vsel %vm508, %v464, 0
      %v950 = vsel %vm508, %v465, 0
      %v953 = vsel %vm508, %v466, 0
      %v956 = vsel %vm508, %v467, 0
      %958 = vmatprep.subr.mxu0 %v469
      %959 = vmatpush1.msra.mxu0 %v468
      %960 = vmatprep.subr.mxu0 %v471
      %961 = vmatpush1.msra.mxu0 %v470
      %962 = vmatprep.subr.mxu0 0.0
      %963 = vmatpush1.msra.mxu0 0.0
      %964 = vmatprep.subr.mxu0 0.0
      %965 = vmatpush1.msra.mxu0 0.0
      %966 = vmatprep.subr.mxu0 0.0
      %967 = vmatpush1.msra.mxu0 0.0
      %968 = vmatprep.subr.mxu0 0.0
      %969 = vmatpush1.msra.mxu0 0.0
      %970 = vmatprep.subr.mxu0 0.0
      %971 = vmatpush1.msra.mxu0 0.0
      %972 = vmatprep.subr.mxu0 0.0
      %973 = vmatpush1.msra.mxu0 0.0
      %974 = vmatprep.subr.mxu0 0.0
      %975 = vmatpush1.msra.mxu0 0.0
      %976 = vmatprep.subr.mxu0 0.0
      %977 = vmatpush1.msra.mxu0 0.0
      %978 = vmatprep.subr.mxu0 0.0
      %979 = vmatpush1.msra.mxu0 0.0
      %980 = vmatprep.subr.mxu0 0.0
      %981 = vmatpush1.msra.mxu0 0.0
      %982 = vmatprep.subr.mxu0 0.0
      %983 = vmatpush1.msra.mxu0 0.0
      %984 = vmatprep.subr.mxu0 0.0
      %985 = vmatpush1.msra.mxu0 0.0
      %986 = vmatprep.subr.mxu0 0.0
      %987 = vmatpush1.msra.mxu0 0.0
      %988 = vmatprep.subr.mxu0 0.0
      %989 = vmatpush1.msra.mxu0 0.0
      %990 = vmatprep.subr.mxu0 0.0
      %991 = vmatpush1.msra.mxu0 0.0
      %992 = vmatprep.subr.mxu0 0.0
      %993 = vmatpush1.msra.mxu0 0.0
      %994 = vmatprep.subr.mxu0 0.0
      %995 = vmatpush1.msra.mxu0 0.0
      %996 = vmatprep.subr.mxu0 0.0
      %997 = vmatpush1.msra.mxu0 0.0
      %998 = vmatprep.subr.mxu0 0.0
      %999 = vmatpush1.msra.mxu0 0.0
      %1000 = vmatprep.subr.mxu0 0.0
      %1001 = vmatpush1.msra.mxu0 0.0
      %1002 = vmatprep.subr.mxu0 0.0
      %1003 = vmatpush1.msra.mxu0 0.0
      %1004 = vmatprep.subr.mxu0 0.0
      %1005 = vmatpush1.msra.mxu0 0.0
      %1006 = vmatprep.subr.mxu0 0.0
      %1007 = vmatpush1.msra.mxu0 0.0
      %1008 = vmatprep.subr.mxu0 0.0
      %1009 = vmatpush1.msra.mxu0 0.0
      %1010 = vmatprep.subr.mxu0 0.0
      %1011 = vmatpush1.msra.mxu0 0.0
      %1012 = vmatprep.subr.mxu0 0.0
      %1013 = vmatpush1.msra.mxu0 0.0
      %1014 = vmatprep.subr.mxu0 0.0
      %1015 = vmatpush1.msra.mxu0 0.0
      %1016 = vmatprep.subr.mxu0 0.0
      %1017 = vmatpush1.msra.mxu0 0.0
      %1018 = vmatprep.subr.mxu0 0.0
      %1019 = vmatpush1.msra.mxu0 0.0
      %1020 = vmatprep.subr.mxu0 0.0
      %1021 = vmatpush1.msra.mxu0 0.0
      %1022 = vmatprep.mubr.f32.mxu0 0.0
      %1023 = vmatmul.mubr.f32.gmra.mrb[0].mxu0 %v863
      %v1024 = vpop.f32.mrb[0].mxu0
      %v1025 = vadd.f32 %v672, %v1024
      %v1026 = vpop.f32.mrb[0].mxu0
      %v1027 = vadd.f32 %v674, %v1026
      %1028 = vmatprep.mubr.f32.mxu0 0.0
      %1029 = vmatmul.mubr.f32.gmra.mrb[0].mxu0 %v866
      %v1030 = vpop.f32.mrb[0].mxu0
      %v1031 = vadd.f32 %v678, %v1030
      %v1032 = vpop.f32.mrb[0].mxu0
      %v1033 = vadd.f32 %v680, %v1032
      %1034 = vmatprep.mubr.f32.mxu0 0.0
      %1035 = vmatmul.mubr.f32.gmra.mrb[0].mxu0 %v869
      %v1036 = vpop.f32.mrb[0].mxu0
      %v1037 = vadd.f32 %v684, %v1036
      %v1038 = vpop.f32.mrb[0].mxu0
      %v1039 = vadd.f32 %v686, %v1038
      %1040 = vmatprep.mubr.f32.mxu0 0.0
      %1041 = vmatmul.mubr.f32.gmra.mrb[0].mxu0 %v872
      %v1042 = vpop.f32.mrb[0].mxu0
      %v1043 = vadd.f32 %v690, %v1042
      %v1044 = vpop.f32.mrb[0].mxu0
      %v1045 = vadd.f32 %v692, %v1044
      %1046 = vmatprep.mubr.f32.mxu0 0.0
      %1047 = vmatmul.mubr.f32.gmra.mrb[0].mxu0 %v875
      %v1048 = vpop.f32.mrb[0].mxu0
      %v1049 = vadd.f32 %v696, %v1048
      %v1050 = vpop.f32.mrb[0].mxu0
      %v1051 = vadd.f32 %v698, %v1050
      %1052 = vmatprep.mubr.f32.mxu0 0.0
      %1053 = vmatmul.mubr.f32.gmra.mrb[0].mxu0 %v878
      %v1054 = vpop.f32.mrb[0].mxu0
      %v1055 = vadd.f32 %v702, %v1054
      %v1056 = vpop.f32.mrb[0].mxu0
      %v1057 = vadd.f32 %v704, %v1056
      %1058 = vmatprep.mubr.f32.mxu0 0.0
      %1059 = vmatmul.mubr.f32.gmra.mrb[0].mxu0 %v881
      %v1060 = vpop.f32.mrb[0].mxu0
      %v1061 = vadd.f32 %v708, %v1060
      %v1062 = vpop.f32.mrb[0].mxu0
      %v1063 = vadd.f32 %v710, %v1062
      %1064 = vmatprep.mubr.f32.mxu0 0.0
      %1065 = vmatmul.mubr.f32.gmra.mrb[0].mxu0 %v884
      %v1066 = vpop.f32.mrb[0].mxu0
      %v1067 = vadd.f32 %v714, %v1066
      %v1068 = vpop.f32.mrb[0].mxu0
      %v1069 = vadd.f32 %v716, %v1068
      %1070 = vmatprep.mubr.f32.mxu0 0.0
      %1071 = vmatmul.mubr.f32.gmra.mrb[0].mxu0 %v887
      %v1072 = vpop.f32.mrb[0].mxu0
      %v1073 = vadd.f32 %v720, %v1072
      %v1074 = vpop.f32.mrb[0].mxu0
      %v1075 = vadd.f32 %v722, %v1074
      %1076 = vmatprep.mubr.f32.mxu0 0.0
      %1077 = vmatmul.mubr.f32.gmra.mrb[0].mxu0 %v890
      %v1078 = vpop.f32.mrb[0].mxu0
      %v1079 = vadd.f32 %v726, %v1078
      %v1080 = vpop.f32.mrb[0].mxu0
      %v1081 = vadd.f32 %v728, %v1080
      %1082 = vmatprep.mubr.f32.mxu0 0.0
      %1083 = vmatmul.mubr.f32.gmra.mrb[0].mxu0 %v893
      %v1084 = vpop.f32.mrb[0].mxu0
      %v1085 = vadd.f32 %v732, %v1084
      %v1086 = vpop.f32.mrb[0].mxu0
      %v1087 = vadd.f32 %v734, %v1086
      %1088 = vmatprep.mubr.f32.mxu0 0.0
      %1089 = vmatmul.mubr.f32.gmra.mrb[0].mxu0 %v896
      %v1090 = vpop.f32.mrb[0].mxu0
      %v1091 = vadd.f32 %v738, %v1090
      %v1092 = vpop.f32.mrb[0].mxu0
      %v1093 = vadd.f32 %v740, %v1092
      %1094 = vmatprep.mubr.f32.mxu0 0.0
      %1095 = vmatmul.mubr.f32.gmra.mrb[0].mxu0 %v899
      %v1096 = vpop.f32.mrb[0].mxu0
      %v1097 = vadd.f32 %v744, %v1096
      %v1098 = vpop.f32.mrb[0].mxu0
      %v1099 = vadd.f32 %v746, %v1098
      %1100 = vmatprep.mubr.f32.mxu0 0.0
      %1101 = vmatmul.mubr.f32.gmra.mrb[0].mxu0 %v902
      %v1102 = vpop.f32.mrb[0].mxu0
      %v1103 = vadd.f32 %v750, %v1102
      %v1104 = vpop.f32.mrb[0].mxu0
      %v1105 = vadd.f32 %v752, %v1104
      %1106 = vmatprep.mubr.f32.mxu0 0.0
      %1107 = vmatmul.mubr.f32.gmra.mrb[0].mxu0 %v905
      %v1108 = vpop.f32.mrb[0].mxu0
      %v1109 = vadd.f32 %v756, %v1108
      %v1110 = vpop.f32.mrb[0].mxu0
      %v1111 = vadd.f32 %v758, %v1110
      %1112 = vmatprep.mubr.f32.mxu0 0.0
      %1113 = vmatmul.mubr.f32.gmra.mrb[0].mxu0 %v908
      %v1114 = vpop.f32.mrb[0].mxu0
      %v1115 = vadd.f32 %v762, %v1114
      %v1116 = vpop.f32.mrb[0].mxu0
      %v1117 = vadd.f32 %v764, %v1116
      %1118 = vmatprep.mubr.f32.mxu0 0.0
      %1119 = vmatmul.mubr.f32.gmra.mrb[0].mxu0 %v911
      %v1120 = vpop.f32.mrb[0].mxu0
      %v1121 = vadd.f32 %v768, %v1120
      %v1122 = vpop.f32.mrb[0].mxu0
      %v1123 = vadd.f32 %v770, %v1122
      %1124 = vmatprep.mubr.f32.mxu0 0.0
      %1125 = vmatmul.mubr.f32.gmra.mrb[0].mxu0 %v914
      %v1126 = vpop.f32.mrb[0].mxu0
      %v1127 = vadd.f32 %v774, %v1126
      %v1128 = vpop.f32.mrb[0].mxu0
      %v1129 = vadd.f32 %v776, %v1128
      %1130 = vmatprep.mubr.f32.mxu0 0.0
      %1131 = vmatmul.mubr.f32.gmra.mrb[0].mxu0 %v917
      %v1132 = vpop.f32.mrb[0].mxu0
      %v1133 = vadd.f32 %v780, %v1132
      %v1134 = vpop.f32.mrb[0].mxu0
      %v1135 = vadd.f32 %v782, %v1134
      %1136 = vmatprep.mubr.f32.mxu0 0.0
      %1137 = vmatmul.mubr.f32.gmra.mrb[0].mxu0 %v920
      %v1138 = vpop.f32.mrb[0].mxu0
      %v1139 = vadd.f32 %v786, %v1138
      %v1140 = vpop.f32.mrb[0].mxu0
      %v1141 = vadd.f32 %v788, %v1140
      %1142 = vmatprep.mubr.f32.mxu0 0.0
      %1143 = vmatmul.mubr.f32.gmra.mrb[0].mxu0 %v923
      %v1144 = vpop.f32.mrb[0].mxu0
      %v1145 = vadd.f32 %v792, %v1144
      %v1146 = vpop.f32.mrb[0].mxu0
      %v1147 = vadd.f32 %v794, %v1146
      %1148 = vmatprep.mubr.f32.mxu0 0.0
      %1149 = vmatmul.mubr.f32.gmra.mrb[0].mxu0 %v926
      %v1150 = vpop.f32.mrb[0].mxu0
      %v1151 = vadd.f32 %v798, %v1150
      %v1152 = vpop.f32.mrb[0].mxu0
      %v1153 = vadd.f32 %v800, %v1152
      %1154 = vmatprep.mubr.f32.mxu0 0.0
      %1155 = vmatmul.mubr.f32.gmra.mrb[0].mxu0 %v929
      %v1156 = vpop.f32.mrb[0].mxu0
      %v1157 = vadd.f32 %v804, %v1156
      %v1158 = vpop.f32.mrb[0].mxu0
      %v1159 = vadd.f32 %v806, %v1158
      %1160 = vmatprep.mubr.f32.mxu0 0.0
      %1161 = vmatmul.mubr.f32.gmra.mrb[0].mxu0 %v932
      %v1162 = vpop.f32.mrb[0].mxu0
      %v1163 = vadd.f32 %v810, %v1162
      %v1164 = vpop.f32.mrb[0].mxu0
      %v1165 = vadd.f32 %v812, %v1164
      %1166 = vmatprep.mubr.f32.mxu0 0.0
      %1167 = vmatmul.mubr.f32.gmra.mrb[0].mxu0 %v935
      %v1168 = vpop.f32.mrb[0].mxu0
      %v1169 = vadd.f32 %v816, %v1168
      %v1170 = vpop.f32.mrb[0].mxu0
      %v1171 = vadd.f32 %v818, %v1170
      %1172 = vmatprep.mubr.f32.mxu0 0.0
      %1173 = vmatmul.mubr.f32.gmra.mrb[0].mxu0 %v938
      %v1174 = vpop.f32.mrb[0].mxu0
      %v1175 = vadd.f32 %v822, %v1174
      %v1176 = vpop.f32.mrb[0].mxu0
      %v1177 = vadd.f32 %v824, %v1176
      %1178 = vmatprep.mubr.f32.mxu0 0.0
      %1179 = vmatmul.mubr.f32.gmra.mrb[0].mxu0 %v941
      %v1180 = vpop.f32.mrb[0].mxu0
      %v1181 = vadd.f32 %v828, %v1180
      %v1182 = vpop.f32.mrb[0].mxu0
      %v1183 = vadd.f32 %v830, %v1182
      %1184 = vmatprep.mubr.f32.mxu0 0.0
      %1185 = vmatmul.mubr.f32.gmra.mrb[0].mxu0 %v944
      %v1186 = vpop.f32.mrb[0].mxu0
      %v1187 = vadd.f32 %v834, %v1186
      %v1188 = vpop.f32.mrb[0].mxu0
      %v1189 = vadd.f32 %v836, %v1188
      %1190 = vmatprep.mubr.f32.mxu0 0.0
      %1191 = vmatmul.mubr.f32.gmra.mrb[0].mxu0 %v947
      %v1192 = vpop.f32.mrb[0].mxu0
      %v1193 = vadd.f32 %v840, %v1192
      %v1194 = vpop.f32.mrb[0].mxu0
      %v1195 = vadd.f32 %v842, %v1194
      %1196 = vmatprep.mubr.f32.mxu0 0.0
      %1197 = vmatmul.mubr.f32.gmra.mrb[0].mxu0 %v950
      %v1198 = vpop.f32.mrb[0].mxu0
      %v1199 = vadd.f32 %v846, %v1198
      %v1200 = vpop.f32.mrb[0].mxu0
      %v1201 = vadd.f32 %v848, %v1200
      %1202 = vmatprep.mubr.f32.mxu0 0.0
      %1203 = vmatmul.mubr.f32.gmra.mrb[0].mxu0 %v953
      %v1204 = vpop.f32.mrb[0].mxu0
      %v1205 = vadd.f32 %v852, %v1204
      %v1206 = vpop.f32.mrb[0].mxu0
      %v1207 = vadd.f32 %v854, %v1206
      %1208 = vmatprep.mubr.f32.mxu0 0.0
      %1209 = vmatmul.mubr.f32.gmra.mrb[0].mxu0 %v956
      %v1210 = vpop.f32.mrb[0].mxu0
      %v1211 = vadd.f32 %v858, %v1210
      %v1212 = vpop.f32.mrb[0].mxu0
      %v1213 = vadd.f32 %v860, %v1212
      %1214 = vdwg.mxu0
      %v1215 = vld [vmem:[%s428] sm:$0xff]
      %v1216 = vld [vmem:[%s428 + $0x8] sm:$0xff]
      %v1217 = vld [vmem:[%s428 + $0x10] sm:$0xff]
      %v1218 = vld [vmem:[%s428 + $0x18] sm:$0xff]
      %v1219 = vld [vmem:[%s428 + $0x20] sm:$0xff]
      %v1220 = vld [vmem:[%s428 + $0x28] sm:$0xff]
      %v1221 = vld [vmem:[%s428 + $0x30] sm:$0xff]
      %v1222 = vld [vmem:[%s428 + $0x38] sm:$0xff]
      %v1223 = vld [vmem:[%s428 + $0x40] sm:$0xff]
      %v1224 = vld [vmem:[%s428 + $0x48] sm:$0xff]
      %v1225 = vld [vmem:[%s428 + $0x50] sm:$0xff]
      %v1226 = vld [vmem:[%s428 + $0x58] sm:$0xff]
      %v1227 = vld [vmem:[%s428 + $0x60] sm:$0xff]
      %v1228 = vld [vmem:[%s428 + $0x68] sm:$0xff]
      %v1229 = vld [vmem:[%s428 + $0x70] sm:$0xff]
      %v1230 = vld [vmem:[%s428 + $0x78] sm:$0xff]
      %v1231 = vld [vmem:[%s428 + $0x80] sm:$0xff]
      %v1232 = vld [vmem:[%s428 + $0x88] sm:$0xff]
      %v1233 = vld [vmem:[%s428 + $0x90] sm:$0xff]
      %v1234 = vld [vmem:[%s428 + $0x98] sm:$0xff]
      %v1235 = vld [vmem:[%s428 + $0xa0] sm:$0xff]
      %v1236 = vld [vmem:[%s428 + $0xa8] sm:$0xff]
      %v1237 = vld [vmem:[%s428 + $0xb0] sm:$0xff]
      %v1238 = vld [vmem:[%s428 + $0xb8] sm:$0xff]
      %v1239 = vld [vmem:[%s428 + $0xc0] sm:$0xff]
      %v1240 = vld [vmem:[%s428 + $0xc8] sm:$0xff]
      %v1241 = vld [vmem:[%s428 + $0xd0] sm:$0xff]
      %v1242 = vld [vmem:[%s428 + $0xd8] sm:$0xff]
      %v1243 = vld [vmem:[%s428 + $0xe0] sm:$0xff]
      %v1244 = vld [vmem:[%s428 + $0xe8] sm:$0xff]
      %v1245 = vld [vmem:[%s428 + $0xf0] sm:$0xff]
      %v1246 = vld [vmem:[%s428 + $0xf8] sm:$0xff]
      %v1247 = vld [vmem:[%s5] sm:$0xff]
      %v1248 = vld [vmem:[%s5 + $0x8] sm:$0xff]
      %vm1249 = vcmask 64512
      %v1251 = vsel %vm1249, %v1215, 0
      %v1254 = vsel %vm1249, %v1216, 0
      %v1257 = vsel %vm1249, %v1217, 0
      %v1260 = vsel %vm1249, %v1218, 0
      %v1263 = vsel %vm1249, %v1219, 0
      %v1266 = vsel %vm1249, %v1220, 0
      %v1269 = vsel %vm1249, %v1221, 0
      %v1272 = vsel %vm1249, %v1222, 0
      %v1275 = vsel %vm1249, %v1223, 0
      %v1278 = vsel %vm1249, %v1224, 0
      %v1281 = vsel %vm1249, %v1225, 0
      %v1284 = vsel %vm1249, %v1226, 0
      %v1287 = vsel %vm1249, %v1227, 0
      %v1290 = vsel %vm1249, %v1228, 0
      %v1293 = vsel %vm1249, %v1229, 0
      %v1296 = vsel %vm1249, %v1230, 0
      %v1299 = vsel %vm1249, %v1231, 0
      %v1302 = vsel %vm1249, %v1232, 0
      %v1305 = vsel %vm1249, %v1233, 0
      %v1308 = vsel %vm1249, %v1234, 0
      %v1311 = vsel %vm1249, %v1235, 0
      %v1314 = vsel %vm1249, %v1236, 0
      %v1317 = vsel %vm1249, %v1237, 0
      %v1320 = vsel %vm1249, %v1238, 0
      %v1323 = vsel %vm1249, %v1239, 0
      %v1326 = vsel %vm1249, %v1240, 0
      %v1329 = vsel %vm1249, %v1241, 0
      %v1332 = vsel %vm1249, %v1242, 0
      %v1335 = vsel %vm1249, %v1243, 0
      %v1338 = vsel %vm1249, %v1244, 0
      %v1341 = vsel %vm1249, %v1245, 0
      %v1344 = vsel %vm1249, %v1246, 0
      %1346 = vmatprep.subr.mxu0 %v1248
      %1347 = vmatpush1.msra.mxu0 %v1247
      %1348 = vmatprep.subr.mxu0 0.0
      %1349 = vmatpush1.msra.mxu0 0.0
      %1350 = vmatprep.subr.mxu0 0.0
      %1351 = vmatpush1.msra.mxu0 0.0
      %1352 = vmatprep.subr.mxu0 0.0
      %1353 = vmatpush1.msra.mxu0 0.0
      %1354 = vmatprep.subr.mxu0 0.0
      %1355 = vmatpush1.msra.mxu0 0.0
      %1356 = vmatprep.subr.mxu0 0.0
      %1357 = vmatpush1.msra.mxu0 0.0
      %1358 = vmatprep.subr.mxu0 0.0
      %1359 = vmatpush1.msra.mxu0 0.0
      %1360 = vmatprep.subr.mxu0 0.0
      %1361 = vmatpush1.msra.mxu0 0.0
      %1362 = vmatprep.subr.mxu0 0.0
      %1363 = vmatpush1.msra.mxu0 0.0
      %1364 = vmatprep.subr.mxu0 0.0
      %1365 = vmatpush1.msra.mxu0 0.0
      %1366 = vmatprep.subr.mxu0 0.0
      %1367 = vmatpush1.msra.mxu0 0.0
      %1368 = vmatprep.subr.mxu0 0.0
      %1369 = vmatpush1.msra.mxu0 0.0
      %1370 = vmatprep.subr.mxu0 0.0
      %1371 = vmatpush1.msra.mxu0 0.0
      %1372 = vmatprep.subr.mxu0 0.0
      %1373 = vmatpush1.msra.mxu0 0.0
      %1374 = vmatprep.subr.mxu0 0.0
      %1375 = vmatpush1.msra.mxu0 0.0
      %1376 = vmatprep.subr.mxu0 0.0
      %1377 = vmatpush1.msra.mxu0 0.0
      %1378 = vmatprep.subr.mxu0 0.0
      %1379 = vmatpush1.msra.mxu0 0.0
      %1380 = vmatprep.subr.mxu0 0.0
      %1381 = vmatpush1.msra.mxu0 0.0
      %1382 = vmatprep.subr.mxu0 0.0
      %1383 = vmatpush1.msra.mxu0 0.0
      %1384 = vmatprep.subr.mxu0 0.0
      %1385 = vmatpush1.msra.mxu0 0.0
      %1386 = vmatprep.subr.mxu0 0.0
      %1387 = vmatpush1.msra.mxu0 0.0
      %1388 = vmatprep.subr.mxu0 0.0
      %1389 = vmatpush1.msra.mxu0 0.0
      %1390 = vmatprep.subr.mxu0 0.0
      %1391 = vmatpush1.msra.mxu0 0.0
      %1392 = vmatprep.subr.mxu0 0.0
      %1393 = vmatpush1.msra.mxu0 0.0
      %1394 = vmatprep.subr.mxu0 0.0
      %1395 = vmatpush1.msra.mxu0 0.0
      %1396 = vmatprep.subr.mxu0 0.0
      %1397 = vmatpush1.msra.mxu0 0.0
      %1398 = vmatprep.subr.mxu0 0.0
      %1399 = vmatpush1.msra.mxu0 0.0
      %1400 = vmatprep.subr.mxu0 0.0
      %1401 = vmatpush1.msra.mxu0 0.0
      %1402 = vmatprep.subr.mxu0 0.0
      %1403 = vmatpush1.msra.mxu0 0.0
      %1404 = vmatprep.subr.mxu0 0.0
      %1405 = vmatpush1.msra.mxu0 0.0
      %1406 = vmatprep.subr.mxu0 0.0
      %1407 = vmatpush1.msra.mxu0 0.0
      %1408 = vmatprep.subr.mxu0 0.0
      %1409 = vmatpush1.msra.mxu0 0.0
      %1410 = vmatprep.mubr.f32.mxu0 0.0
      %1411 = vmatmul.mubr.f32.gmra.mrb[0].mxu0 %v1251
      %v1412 = vpop.f32.mrb[0].mxu0
      %v1413 = vadd.f32 0.0, %v1412
      %v1414 = vpop.f32.mrb[0].mxu0
      %v1415 = vadd.f32 0.0, %v1414
      %1416 = vmatprep.mubr.f32.mxu0 0.0
      %1417 = vmatmul.mubr.f32.gmra.mrb[0].mxu0 %v1254
      %v1418 = vpop.f32.mrb[0].mxu0
      %v1419 = vadd.f32 0.0, %v1418
      %v1420 = vpop.f32.mrb[0].mxu0
      %v1421 = vadd.f32 0.0, %v1420
      %1422 = vmatprep.mubr.f32.mxu0 0.0
      %1423 = vmatmul.mubr.f32.gmra.mrb[0].mxu0 %v1257
      %v1424 = vpop.f32.mrb[0].mxu0
      %v1425 = vadd.f32 0.0, %v1424
      %v1426 = vpop.f32.mrb[0].mxu0
      %v1427 = vadd.f32 0.0, %v1426
      %1428 = vmatprep.mubr.f32.mxu0 0.0
      %1429 = vmatmul.mubr.f32.gmra.mrb[0].mxu0 %v1260
      %v1430 = vpop.f32.mrb[0].mxu0
      %v1431 = vadd.f32 0.0, %v1430
      %v1432 = vpop.f32.mrb[0].mxu0
      %v1433 = vadd.f32 0.0, %v1432
      %1434 = vmatprep.mubr.f32.mxu0 0.0
      %1435 = vmatmul.mubr.f32.gmra.mrb[0].mxu0 %v1263
      %v1436 = vpop.f32.mrb[0].mxu0
      %v1437 = vadd.f32 0.0, %v1436
      %v1438 = vpop.f32.mrb[0].mxu0
      %v1439 = vadd.f32 0.0, %v1438
      %1440 = vmatprep.mubr.f32.mxu0 0.0
      %1441 = vmatmul.mubr.f32.gmra.mrb[0].mxu0 %v1266
      %v1442 = vpop.f32.mrb[0].mxu0
      %v1443 = vadd.f32 0.0, %v1442
      %v1444 = vpop.f32.mrb[0].mxu0
      %v1445 = vadd.f32 0.0, %v1444
      %1446 = vmatprep.mubr.f32.mxu0 0.0
      %1447 = vmatmul.mubr.f32.gmra.mrb[0].mxu0 %v1269
      %v1448 = vpop.f32.mrb[0].mxu0
      %v1449 = vadd.f32 0.0, %v1448
      %v1450 = vpop.f32.mrb[0].mxu0
      %v1451 = vadd.f32 0.0, %v1450
      %1452 = vmatprep.mubr.f32.mxu0 0.0
      %1453 = vmatmul.mubr.f32.gmra.mrb[0].mxu0 %v1272
      %v1454 = vpop.f32.mrb[0].mxu0
      %v1455 = vadd.f32 0.0, %v1454
      %v1456 = vpop.f32.mrb[0].mxu0
      %v1457 = vadd.f32 0.0, %v1456
      %1458 = vmatprep.mubr.f32.mxu0 0.0
      %1459 = vmatmul.mubr.f32.gmra.mrb[0].mxu0 %v1275
      %v1460 = vpop.f32.mrb[0].mxu0
      %v1461 = vadd.f32 0.0, %v1460
      %v1462 = vpop.f32.mrb[0].mxu0
      %v1463 = vadd.f32 0.0, %v1462
      %1464 = vmatprep.mubr.f32.mxu0 0.0
      %1465 = vmatmul.mubr.f32.gmra.mrb[0].mxu0 %v1278
      %v1466 = vpop.f32.mrb[0].mxu0
      %v1467 = vadd.f32 0.0, %v1466
      %v1468 = vpop.f32.mrb[0].mxu0
      %v1469 = vadd.f32 0.0, %v1468
      %1470 = vmatprep.mubr.f32.mxu0 0.0
      %1471 = vmatmul.mubr.f32.gmra.mrb[0].mxu0 %v1281
      %v1472 = vpop.f32.mrb[0].mxu0
      %v1473 = vadd.f32 0.0, %v1472
      %v1474 = vpop.f32.mrb[0].mxu0
      %v1475 = vadd.f32 0.0, %v1474
      %1476 = vmatprep.mubr.f32.mxu0 0.0
      %1477 = vmatmul.mubr.f32.gmra.mrb[0].mxu0 %v1284
      %v1478 = vpop.f32.mrb[0].mxu0
      %v1479 = vadd.f32 0.0, %v1478
      %v1480 = vpop.f32.mrb[0].mxu0
      %v1481 = vadd.f32 0.0, %v1480
      %1482 = vmatprep.mubr.f32.mxu0 0.0
      %1483 = vmatmul.mubr.f32.gmra.mrb[0].mxu0 %v1287
      %v1484 = vpop.f32.mrb[0].mxu0
      %v1485 = vadd.f32 0.0, %v1484
      %v1486 = vpop.f32.mrb[0].mxu0
      %v1487 = vadd.f32 0.0, %v1486
      %1488 = vmatprep.mubr.f32.mxu0 0.0
      %1489 = vmatmul.mubr.f32.gmra.mrb[0].mxu0 %v1290
      %v1490 = vpop.f32.mrb[0].mxu0
      %v1491 = vadd.f32 0.0, %v1490
      %v1492 = vpop.f32.mrb[0].mxu0
      %v1493 = vadd.f32 0.0, %v1492
      %1494 = vmatprep.mubr.f32.mxu0 0.0
      %1495 = vmatmul.mubr.f32.gmra.mrb[0].mxu0 %v1293
      %v1496 = vpop.f32.mrb[0].mxu0
      %v1497 = vadd.f32 0.0, %v1496
      %v1498 = vpop.f32.mrb[0].mxu0
      %v1499 = vadd.f32 0.0, %v1498
      %1500 = vmatprep.mubr.f32.mxu0 0.0
      %1501 = vmatmul.mubr.f32.gmra.mrb[0].mxu0 %v1296
      %v1502 = vpop.f32.mrb[0].mxu0
      %v1503 = vadd.f32 0.0, %v1502
      %v1504 = vpop.f32.mrb[0].mxu0
      %v1505 = vadd.f32 0.0, %v1504
      %1506 = vmatprep.mubr.f32.mxu0 0.0
      %1507 = vmatmul.mubr.f32.gmra.mrb[0].mxu0 %v1299
      %v1508 = vpop.f32.mrb[0].mxu0
      %v1509 = vadd.f32 0.0, %v1508
      %v1510 = vpop.f32.mrb[0].mxu0
      %v1511 = vadd.f32 0.0, %v1510
      %1512 = vmatprep.mubr.f32.mxu0 0.0
      %1513 = vmatmul.mubr.f32.gmra.mrb[0].mxu0 %v1302
      %v1514 = vpop.f32.mrb[0].mxu0
      %v1515 = vadd.f32 0.0, %v1514
      %v1516 = vpop.f32.mrb[0].mxu0
      %v1517 = vadd.f32 0.0, %v1516
      %1518 = vmatprep.mubr.f32.mxu0 0.0
      %1519 = vmatmul.mubr.f32.gmra.mrb[0].mxu0 %v1305
      %v1520 = vpop.f32.mrb[0].mxu0
      %v1521 = vadd.f32 0.0, %v1520
      %v1522 = vpop.f32.mrb[0].mxu0
      %v1523 = vadd.f32 0.0, %v1522
      %1524 = vmatprep.mubr.f32.mxu0 0.0
      %1525 = vmatmul.mubr.f32.gmra.mrb[0].mxu0 %v1308
      %v1526 = vpop.f32.mrb[0].mxu0
      %v1527 = vadd.f32 0.0, %v1526
      %v1528 = vpop.f32.mrb[0].mxu0
      %v1529 = vadd.f32 0.0, %v1528
      %1530 = vmatprep.mubr.f32.mxu0 0.0
      %1531 = vmatmul.mubr.f32.gmra.mrb[0].mxu0 %v1311
      %v1532 = vpop.f32.mrb[0].mxu0
      %v1533 = vadd.f32 0.0, %v1532
      %v1534 = vpop.f32.mrb[0].mxu0
      %v1535 = vadd.f32 0.0, %v1534
      %1536 = vmatprep.mubr.f32.mxu0 0.0
      %1537 = vmatmul.mubr.f32.gmra.mrb[0].mxu0 %v1314
      %v1538 = vpop.f32.mrb[0].mxu0
      %v1539 = vadd.f32 0.0, %v1538
      %v1540 = vpop.f32.mrb[0].mxu0
      %v1541 = vadd.f32 0.0, %v1540
      %1542 = vmatprep.mubr.f32.mxu0 0.0
      %1543 = vmatmul.mubr.f32.gmra.mrb[0].mxu0 %v1317
      %v1544 = vpop.f32.mrb[0].mxu0
      %v1545 = vadd.f32 0.0, %v1544
      %v1546 = vpop.f32.mrb[0].mxu0
      %v1547 = vadd.f32 0.0, %v1546
      %1548 = vmatprep.mubr.f32.mxu0 0.0
      %1549 = vmatmul.mubr.f32.gmra.mrb[0].mxu0 %v1320
      %v1550 = vpop.f32.mrb[0].mxu0
      %v1551 = vadd.f32 0.0, %v1550
      %v1552 = vpop.f32.mrb[0].mxu0
      %v1553 = vadd.f32 0.0, %v1552
      %1554 = vmatprep.mubr.f32.mxu0 0.0
      %1555 = vmatmul.mubr.f32.gmra.mrb[0].mxu0 %v1323
      %v1556 = vpop.f32.mrb[0].mxu0
      %v1557 = vadd.f32 0.0, %v1556
      %v1558 = vpop.f32.mrb[0].mxu0
      %v1559 = vadd.f32 0.0, %v1558
      %1560 = vmatprep.mubr.f32.mxu0 0.0
      %1561 = vmatmul.mubr.f32.gmra.mrb[0].mxu0 %v1326
      %v1562 = vpop.f32.mrb[0].mxu0
      %v1563 = vadd.f32 0.0, %v1562
      %v1564 = vpop.f32.mrb[0].mxu0
      %v1565 = vadd.f32 0.0, %v1564
      %1566 = vmatprep.mubr.f32.mxu0 0.0
      %1567 = vmatmul.mubr.f32.gmra.mrb[0].mxu0 %v1329
      %v1568 = vpop.f32.mrb[0].mxu0
      %v1569 = vadd.f32 0.0, %v1568
      %v1570 = vpop.f32.mrb[0].mxu0
      %v1571 = vadd.f32 0.0, %v1570
      %1572 = vmatprep.mubr.f32.mxu0 0.0
      %1573 = vmatmul.mubr.f32.gmra.mrb[0].mxu0 %v1332
      %v1574 = vpop.f32.mrb[0].mxu0
      %v1575 = vadd.f32 0.0, %v1574
      %v1576 = vpop.f32.mrb[0].mxu0
      %v1577 = vadd.f32 0.0, %v1576
      %1578 = vmatprep.mubr.f32.mxu0 0.0
      %1579 = vmatmul.mubr.f32.gmra.mrb[0].mxu0 %v1335
      %v1580 = vpop.f32.mrb[0].mxu0
      %v1581 = vadd.f32 0.0, %v1580
      %v1582 = vpop.f32.mrb[0].mxu0
      %v1583 = vadd.f32 0.0, %v1582
      %1584 = vmatprep.mubr.f32.mxu0 0.0
      %1585 = vmatmul.mubr.f32.gmra.mrb[0].mxu0 %v1338
      %v1586 = vpop.f32.mrb[0].mxu0
      %v1587 = vadd.f32 0.0, %v1586
      %v1588 = vpop.f32.mrb[0].mxu0
      %v1589 = vadd.f32 0.0, %v1588
      %1590 = vmatprep.mubr.f32.mxu0 0.0
      %1591 = vmatmul.mubr.f32.gmra.mrb[0].mxu0 %v1341
      %v1592 = vpop.f32.mrb[0].mxu0
      %v1593 = vadd.f32 0.0, %v1592
      %v1594 = vpop.f32.mrb[0].mxu0
      %v1595 = vadd.f32 0.0, %v1594
      %1596 = vmatprep.mubr.f32.mxu0 0.0
      %1597 = vmatmul.mubr.f32.gmra.mrb[0].mxu0 %v1344
      %v1598 = vpop.f32.mrb[0].mxu0
      %v1599 = vadd.f32 0.0, %v1598
      %v1600 = vpop.f32.mrb[0].mxu0
      %v1601 = vadd.f32 0.0, %v1600
      %1602 = vdwg.mxu0
      %v1603 = vadd.f32 %v1025, %v1413
      %v1604 = vadd.f32 %v1027, %v1415
      %v1605 = vadd.f32 %v1031, %v1419
      %v1606 = vadd.f32 %v1033, %v1421
      %v1607 = vadd.f32 %v1037, %v1425
      %v1608 = vadd.f32 %v1039, %v1427
      %v1609 = vadd.f32 %v1043, %v1431
      %v1610 = vadd.f32 %v1045, %v1433
      %v1611 = vadd.f32 %v1049, %v1437
      %v1612 = vadd.f32 %v1051, %v1439
      %v1613 = vadd.f32 %v1055, %v1443
      %v1614 = vadd.f32 %v1057, %v1445
      %v1615 = vadd.f32 %v1061, %v1449
      %v1616 = vadd.f32 %v1063, %v1451
      %v1617 = vadd.f32 %v1067, %v1455
      %v1618 = vadd.f32 %v1069, %v1457
      %v1619 = vadd.f32 %v1073, %v1461
      %v1620 = vadd.f32 %v1075, %v1463
      %v1621 = vadd.f32 %v1079, %v1467
      %v1622 = vadd.f32 %v1081, %v1469
      %v1623 = vadd.f32 %v1085, %v1473
      %v1624 = vadd.f32 %v1087, %v1475
      %v1625 = vadd.f32 %v1091, %v1479
      %v1626 = vadd.f32 %v1093, %v1481
      %v1627 = vadd.f32 %v1097, %v1485
      %v1628 = vadd.f32 %v1099, %v1487
      %v1629 = vadd.f32 %v1103, %v1491
      %v1630 = vadd.f32 %v1105, %v1493
      %v1631 = vadd.f32 %v1109, %v1497
      %v1632 = vadd.f32 %v1111, %v1499
      %v1633 = vadd.f32 %v1115, %v1503
      %v1634 = vadd.f32 %v1117, %v1505
      %v1635 = vadd.f32 %v1121, %v1509
      %v1636 = vadd.f32 %v1123, %v1511
      %v1637 = vadd.f32 %v1127, %v1515
      %v1638 = vadd.f32 %v1129, %v1517
      %v1639 = vadd.f32 %v1133, %v1521
      %v1640 = vadd.f32 %v1135, %v1523
      %v1641 = vadd.f32 %v1139, %v1527
      %v1642 = vadd.f32 %v1141, %v1529
      %v1643 = vadd.f32 %v1145, %v1533
      %v1644 = vadd.f32 %v1147, %v1535
      %v1645 = vadd.f32 %v1151, %v1539
      %v1646 = vadd.f32 %v1153, %v1541
      %v1647 = vadd.f32 %v1157, %v1545
      %v1648 = vadd.f32 %v1159, %v1547
      %v1649 = vadd.f32 %v1163, %v1551
      %v1650 = vadd.f32 %v1165, %v1553
      %v1651 = vadd.f32 %v1169, %v1557
      %v1652 = vadd.f32 %v1171, %v1559
      %v1653 = vadd.f32 %v1175, %v1563
      %v1654 = vadd.f32 %v1177, %v1565
      %v1655 = vadd.f32 %v1181, %v1569
      %v1656 = vadd.f32 %v1183, %v1571
      %v1657 = vadd.f32 %v1187, %v1575
      %v1658 = vadd.f32 %v1189, %v1577
      %v1659 = vadd.f32 %v1193, %v1581
      %v1660 = vadd.f32 %v1195, %v1583
      %v1661 = vadd.f32 %v1199, %v1587
      %v1662 = vadd.f32 %v1201, %v1589
      %v1663 = vadd.f32 %v1205, %v1593
      %v1664 = vadd.f32 %v1207, %v1595
      %v1665 = vadd.f32 %v1211, %v1599
      %v1666 = vadd.f32 %v1213, %v1601
      %v1667 = vld [vmem:[%s6] sm:$0x3]
      %v1669 = vlaneseq
      %v1670 = vshrl.u32 %v1669, 7
      %v1671 = vsub.s32 0, %v1670
      %v1672 = vrot.slane %v1667, %v1671
      %v1673 = vlaneseq
      %v1674 = vshrl.u32 %v1673, 7
      %v1675 = vsub.s32 1, %v1674
      %v1676 = vrot.slane %v1667, %v1675
      %v1679 = vadd.f32 %v1603, %v1672
      %v1680 = vadd.f32 %v1604, %v1676
      %v1681 = vadd.f32 %v1605, %v1672
      %v1682 = vadd.f32 %v1606, %v1676
      %v1683 = vadd.f32 %v1607, %v1672
      %v1684 = vadd.f32 %v1608, %v1676
      %v1685 = vadd.f32 %v1609, %v1672
      %v1686 = vadd.f32 %v1610, %v1676
      %v1687 = vadd.f32 %v1611, %v1672
      %v1688 = vadd.f32 %v1612, %v1676
      %v1689 = vadd.f32 %v1613, %v1672
      %v1690 = vadd.f32 %v1614, %v1676
      %v1691 = vadd.f32 %v1615, %v1672
      %v1692 = vadd.f32 %v1616, %v1676
      %v1693 = vadd.f32 %v1617, %v1672
      %v1694 = vadd.f32 %v1618, %v1676
      %v1695 = vadd.f32 %v1619, %v1672
      %v1696 = vadd.f32 %v1620, %v1676
      %v1697 = vadd.f32 %v1621, %v1672
      %v1698 = vadd.f32 %v1622, %v1676
      %v1699 = vadd.f32 %v1623, %v1672
      %v1700 = vadd.f32 %v1624, %v1676
      %v1701 = vadd.f32 %v1625, %v1672
      %v1702 = vadd.f32 %v1626, %v1676
      %v1703 = vadd.f32 %v1627, %v1672
      %v1704 = vadd.f32 %v1628, %v1676
      %v1705 = vadd.f32 %v1629, %v1672
      %v1706 = vadd.f32 %v1630, %v1676
      %v1707 = vadd.f32 %v1631, %v1672
      %v1708 = vadd.f32 %v1632, %v1676
      %v1709 = vadd.f32 %v1633, %v1672
      %v1710 = vadd.f32 %v1634, %v1676
      %v1711 = vadd.f32 %v1635, %v1672
      %v1712 = vadd.f32 %v1636, %v1676
      %v1713 = vadd.f32 %v1637, %v1672
      %v1714 = vadd.f32 %v1638, %v1676
      %v1715 = vadd.f32 %v1639, %v1672
      %v1716 = vadd.f32 %v1640, %v1676
      %v1717 = vadd.f32 %v1641, %v1672
      %v1718 = vadd.f32 %v1642, %v1676
      %v1719 = vadd.f32 %v1643, %v1672
      %v1720 = vadd.f32 %v1644, %v1676
      %v1721 = vadd.f32 %v1645, %v1672
      %v1722 = vadd.f32 %v1646, %v1676
      %v1723 = vadd.f32 %v1647, %v1672
      %v1724 = vadd.f32 %v1648, %v1676
      %v1725 = vadd.f32 %v1649, %v1672
      %v1726 = vadd.f32 %v1650, %v1676
      %v1727 = vadd.f32 %v1651, %v1672
      %v1728 = vadd.f32 %v1652, %v1676
      %v1729 = vadd.f32 %v1653, %v1672
      %v1730 = vadd.f32 %v1654, %v1676
      %v1731 = vadd.f32 %v1655, %v1672
      %v1732 = vadd.f32 %v1656, %v1676
      %v1733 = vadd.f32 %v1657, %v1672
      %v1734 = vadd.f32 %v1658, %v1676
      %v1735 = vadd.f32 %v1659, %v1672
      %v1736 = vadd.f32 %v1660, %v1676
      %v1737 = vadd.f32 %v1661, %v1672
      %v1738 = vadd.f32 %v1662, %v1676
      %v1739 = vadd.f32 %v1663, %v1672
      %v1740 = vadd.f32 %v1664, %v1676
      %v1741 = vadd.f32 %v1665, %v1672
      %v1742 = vadd.f32 %v1666, %v1676
      %v1743 = vtanh.pop %v1679
      %v1744 = vtanh.pop %v1680
      %v1745 = vtanh.pop %v1681
      %v1746 = vtanh.pop %v1682
      %v1747 = vtanh.pop %v1683
      %v1748 = vtanh.pop %v1684
      %v1749 = vtanh.pop %v1685
      %v1750 = vtanh.pop %v1686
      %v1751 = vtanh.pop %v1687
      %v1752 = vtanh.pop %v1688
      %v1753 = vtanh.pop %v1689
      %v1754 = vtanh.pop %v1690
      %v1755 = vtanh.pop %v1691
      %v1756 = vtanh.pop %v1692
      %v1757 = vtanh.pop %v1693
      %v1758 = vtanh.pop %v1694
      %v1759 = vtanh.pop %v1695
      %v1760 = vtanh.pop %v1696
      %v1761 = vtanh.pop %v1697
      %v1762 = vtanh.pop %v1698
      %v1763 = vtanh.pop %v1699
      %v1764 = vtanh.pop %v1700
      %v1765 = vtanh.pop %v1701
      %v1766 = vtanh.pop %v1702
      %v1767 = vtanh.pop %v1703
      %v1768 = vtanh.pop %v1704
      %v1769 = vtanh.pop %v1705
      %v1770 = vtanh.pop %v1706
      %v1771 = vtanh.pop %v1707
      %v1772 = vtanh.pop %v1708
      %v1773 = vtanh.pop %v1709
      %v1774 = vtanh.pop %v1710
      %v1775 = vtanh.pop %v1711
      %v1776 = vtanh.pop %v1712
      %v1777 = vtanh.pop %v1713
      %v1778 = vtanh.pop %v1714
      %v1779 = vtanh.pop %v1715
      %v1780 = vtanh.pop %v1716
      %v1781 = vtanh.pop %v1717
      %v1782 = vtanh.pop %v1718
      %v1783 = vtanh.pop %v1719
      %v1784 = vtanh.pop %v1720
      %v1785 = vtanh.pop %v1721
      %v1786 = vtanh.pop %v1722
      %v1787 = vtanh.pop %v1723
      %v1788 = vtanh.pop %v1724
      %v1789 = vtanh.pop %v1725
      %v1790 = vtanh.pop %v1726
      %v1791 = vtanh.pop %v1727
      %v1792 = vtanh.pop %v1728
      %v1793 = vtanh.pop %v1729
      %v1794 = vtanh.pop %v1730
      %v1795 = vtanh.pop %v1731
      %v1796 = vtanh.pop %v1732
      %v1797 = vtanh.pop %v1733
      %v1798 = vtanh.pop %v1734
      %v1799 = vtanh.pop %v1735
      %v1800 = vtanh.pop %v1736
      %v1801 = vtanh.pop %v1737
      %v1802 = vtanh.pop %v1738
      %v1803 = vtanh.pop %v1739
      %v1804 = vtanh.pop %v1740
      %v1805 = vtanh.pop %v1741
      %v1806 = vtanh.pop %v1742
      %v1807 = vld [vmem:[%s7] sm:$0xff]
      %v1808 = vld [vmem:[%s7 + $0x8] sm:$0xff]
      %v1809 = vld [vmem:[%s7 + $0x10] sm:$0xff]
      %v1810 = vld [vmem:[%s7 + $0x18] sm:$0xff]
      %v1811 = vld [vmem:[%s7 + $0x20] sm:$0xff]
      %v1812 = vld [vmem:[%s7 + $0x28] sm:$0xff]
      %v1813 = vld [vmem:[%s7 + $0x30] sm:$0xff]
      %v1814 = vld [vmem:[%s7 + $0x38] sm:$0xff]
      %v1815 = vld [vmem:[%s7 + $0x40] sm:$0xff]
      %v1816 = vld [vmem:[%s7 + $0x48] sm:$0xff]
      %v1817 = vld [vmem:[%s7 + $0x50] sm:$0xff]
      %v1818 = vld [vmem:[%s7 + $0x58] sm:$0xff]
      %v1819 = vld [vmem:[%s7 + $0x60] sm:$0xff]
      %v1820 = vld [vmem:[%s7 + $0x68] sm:$0xff]
      %v1821 = vld [vmem:[%s7 + $0x70] sm:$0xff]
      %v1822 = vld [vmem:[%s7 + $0x78] sm:$0xff]
      %v1823 = vld [vmem:[%s7 + $0x80] sm:$0xff]
      %v1824 = vld [vmem:[%s7 + $0x88] sm:$0xff]
      %v1825 = vld [vmem:[%s7 + $0x90] sm:$0xff]
      %v1826 = vld [vmem:[%s7 + $0x98] sm:$0xff]
      %v1827 = vld [vmem:[%s7 + $0xa0] sm:$0xff]
      %v1828 = vld [vmem:[%s7 + $0xa8] sm:$0xff]
      %v1829 = vld [vmem:[%s7 + $0xb0] sm:$0xff]
      %v1830 = vld [vmem:[%s7 + $0xb8] sm:$0xff]
      %v1831 = vld [vmem:[%s7 + $0xc0] sm:$0xff]
      %v1832 = vld [vmem:[%s7 + $0xc8] sm:$0xff]
      %v1833 = vld [vmem:[%s7 + $0xd0] sm:$0xff]
      %v1834 = vld [vmem:[%s7 + $0xd8] sm:$0xff]
      %v1835 = vld [vmem:[%s7 + $0xe0] sm:$0xff]
      %v1836 = vld [vmem:[%s7 + $0xe8] sm:$0xff]
      %v1837 = vld [vmem:[%s7 + $0xf0] sm:$0xff]
      %v1838 = vld [vmem:[%s7 + $0xf8] sm:$0xff]
      %v1839 = vld [vmem:[%s7 + $0x100] sm:$0xff]
      %v1840 = vld [vmem:[%s7 + $0x108] sm:$0xff]
      %v1841 = vld [vmem:[%s7 + $0x110] sm:$0xff]
      %v1842 = vld [vmem:[%s7 + $0x118] sm:$0xff]
      %v1843 = vld [vmem:[%s7 + $0x120] sm:$0xff]
      %v1844 = vld [vmem:[%s7 + $0x128] sm:$0xff]
      %v1845 = vld [vmem:[%s7 + $0x130] sm:$0xff]
      %v1846 = vld [vmem:[%s7 + $0x138] sm:$0xff]
      %v1847 = vld [vmem:[%s7 + $0x140] sm:$0xff]
      %v1848 = vld [vmem:[%s7 + $0x148] sm:$0xff]
      %v1849 = vld [vmem:[%s7 + $0x150] sm:$0xff]
      %v1850 = vld [vmem:[%s7 + $0x158] sm:$0xff]
      %v1851 = vld [vmem:[%s7 + $0x160] sm:$0xff]
      %v1852 = vld [vmem:[%s7 + $0x168] sm:$0xff]
      %v1853 = vld [vmem:[%s7 + $0x170] sm:$0xff]
      %v1854 = vld [vmem:[%s7 + $0x178] sm:$0xff]
      %v1855 = vld [vmem:[%s7 + $0x180] sm:$0xff]
      %v1856 = vld [vmem:[%s7 + $0x188] sm:$0xff]
      %v1857 = vld [vmem:[%s7 + $0x190] sm:$0xff]
      %v1858 = vld [vmem:[%s7 + $0x198] sm:$0xff]
      %v1859 = vld [vmem:[%s7 + $0x1a0] sm:$0xff]
      %v1860 = vld [vmem:[%s7 + $0x1a8] sm:$0xff]
      %v1861 = vld [vmem:[%s7 + $0x1b0] sm:$0xff]
      %v1862 = vld [vmem:[%s7 + $0x1b8] sm:$0xff]
      %v1863 = vld [vmem:[%s7 + $0x1c0] sm:$0xff]
      %v1864 = vld [vmem:[%s7 + $0x1c8] sm:$0xff]
      %v1865 = vld [vmem:[%s7 + $0x1d0] sm:$0xff]
      %v1866 = vld [vmem:[%s7 + $0x1d8] sm:$0xff]
      %v1867 = vld [vmem:[%s7 + $0x1e0] sm:$0xff]
      %v1868 = vld [vmem:[%s7 + $0x1e8] sm:$0xff]
      %v1869 = vld [vmem:[%s7 + $0x1f0] sm:$0xff]
      %v1870 = vld [vmem:[%s7 + $0x1f8] sm:$0xff]
      %v1871 = vld [vmem:[%s8] sm:$0x3]
      %v1873 = vlaneseq
      %v1874 = vshrl.u32 %v1873, 7
      %v1875 = vsub.s32 0, %v1874
      %v1876 = vrot.slane %v1871, %v1875
      %v1877 = vlaneseq
      %v1878 = vshrl.u32 %v1877, 7
      %v1879 = vsub.s32 1, %v1878
      %v1880 = vrot.slane %v1871, %v1879
      %1883 = vmatprep.subr.mxu0 %v1808
      %1884 = vmatpush1.msra.mxu0 %v1807
      %1885 = vmatprep.subr.mxu0 %v1810
      %1886 = vmatpush1.msra.mxu0 %v1809
      %1887 = vmatprep.subr.mxu0 %v1812
      %1888 = vmatpush1.msra.mxu0 %v1811
      %1889 = vmatprep.subr.mxu0 %v1814
      %1890 = vmatpush1.msra.mxu0 %v1813
      %1891 = vmatprep.subr.mxu0 %v1816
      %1892 = vmatpush1.msra.mxu0 %v1815
      %1893 = vmatprep.subr.mxu0 %v1818
      %1894 = vmatpush1.msra.mxu0 %v1817
      %1895 = vmatprep.subr.mxu0 %v1820
      %1896 = vmatpush1.msra.mxu0 %v1819
      %1897 = vmatprep.subr.mxu0 %v1822
      %1898 = vmatpush1.msra.mxu0 %v1821
      %1899 = vmatprep.subr.mxu0 %v1824
      %1900 = vmatpush1.msra.mxu0 %v1823
      %1901 = vmatprep.subr.mxu0 %v1826
      %1902 = vmatpush1.msra.mxu0 %v1825
      %1903 = vmatprep.subr.mxu0 %v1828
      %1904 = vmatpush1.msra.mxu0 %v1827
      %1905 = vmatprep.subr.mxu0 %v1830
      %1906 = vmatpush1.msra.mxu0 %v1829
      %1907 = vmatprep.subr.mxu0 %v1832
      %1908 = vmatpush1.msra.mxu0 %v1831
      %1909 = vmatprep.subr.mxu0 %v1834
      %1910 = vmatpush1.msra.mxu0 %v1833
      %1911 = vmatprep.subr.mxu0 %v1836
      %1912 = vmatpush1.msra.mxu0 %v1835
      %1913 = vmatprep.subr.mxu0 %v1838
      %1914 = vmatpush1.msra.mxu0 %v1837
      %1915 = vmatprep.subr.mxu0 %v1840
      %1916 = vmatpush1.msra.mxu0 %v1839
      %1917 = vmatprep.subr.mxu0 %v1842
      %1918 = vmatpush1.msra.mxu0 %v1841
      %1919 = vmatprep.subr.mxu0 %v1844
      %1920 = vmatpush1.msra.mxu0 %v1843
      %1921 = vmatprep.subr.mxu0 %v1846
      %1922 = vmatpush1.msra.mxu0 %v1845
      %1923 = vmatprep.subr.mxu0 %v1848
      %1924 = vmatpush1.msra.mxu0 %v1847
      %1925 = vmatprep.subr.mxu0 %v1850
      %1926 = vmatpush1.msra.mxu0 %v1849
      %1927 = vmatprep.subr.mxu0 %v1852
      %1928 = vmatpush1.msra.mxu0 %v1851
      %1929 = vmatprep.subr.mxu0 %v1854
      %1930 = vmatpush1.msra.mxu0 %v1853
      %1931 = vmatprep.subr.mxu0 %v1856
      %1932 = vmatpush1.msra.mxu0 %v1855
      %1933 = vmatprep.subr.mxu0 %v1858
      %1934 = vmatpush1.msra.mxu0 %v1857
      %1935 = vmatprep.subr.mxu0 %v1860
      %1936 = vmatpush1.msra.mxu0 %v1859
      %1937 = vmatprep.subr.mxu0 %v1862
      %1938 = vmatpush1.msra.mxu0 %v1861
      %1939 = vmatprep.subr.mxu0 %v1864
      %1940 = vmatpush1.msra.mxu0 %v1863
      %1941 = vmatprep.subr.mxu0 %v1866
      %1942 = vmatpush1.msra.mxu0 %v1865
      %1943 = vmatprep.subr.mxu0 %v1868
      %1944 = vmatpush1.msra.mxu0 %v1867
      %1945 = vmatprep.subr.mxu0 %v1870
      %1946 = vmatpush1.msra.mxu0 %v1869
      %1947 = vmatprep.mubr.f32.mxu0 %v1744
      %1948 = vmatmul.mubr.f32.gmra.mrb[0].mxu0 %v1743
      %v1949 = vpop.f32.mrb[0].mxu0
      %v1950 = vadd.f32 %v1876, %v1949
      %v1951 = vpop.f32.mrb[0].mxu0
      %v1952 = vadd.f32 %v1880, %v1951
      %1953 = vmatprep.mubr.f32.mxu0 %v1746
      %1954 = vmatmul.mubr.f32.gmra.mrb[0].mxu0 %v1745
      %v1955 = vpop.f32.mrb[0].mxu0
      %v1956 = vadd.f32 %v1876, %v1955
      %v1957 = vpop.f32.mrb[0].mxu0
      %v1958 = vadd.f32 %v1880, %v1957
      %1959 = vmatprep.mubr.f32.mxu0 %v1748
      %1960 = vmatmul.mubr.f32.gmra.mrb[0].mxu0 %v1747
      %v1961 = vpop.f32.mrb[0].mxu0
      %v1962 = vadd.f32 %v1876, %v1961
      %v1963 = vpop.f32.mrb[0].mxu0
      %v1964 = vadd.f32 %v1880, %v1963
      %1965 = vmatprep.mubr.f32.mxu0 %v1750
      %1966 = vmatmul.mubr.f32.gmra.mrb[0].mxu0 %v1749
      %v1967 = vpop.f32.mrb[0].mxu0
      %v1968 = vadd.f32 %v1876, %v1967
      %v1969 = vpop.f32.mrb[0].mxu0
      %v1970 = vadd.f32 %v1880, %v1969
      %1971 = vmatprep.mubr.f32.mxu0 %v1752
      %1972 = vmatmul.mubr.f32.gmra.mrb[0].mxu0 %v1751
      %v1973 = vpop.f32.mrb[0].mxu0
      %v1974 = vadd.f32 %v1876, %v1973
      %v1975 = vpop.f32.mrb[0].mxu0
      %v1976 = vadd.f32 %v1880, %v1975
      %1977 = vmatprep.mubr.f32.mxu0 %v1754
      %1978 = vmatmul.mubr.f32.gmra.mrb[0].mxu0 %v1753
      %v1979 = vpop.f32.mrb[0].mxu0
      %v1980 = vadd.f32 %v1876, %v1979
      %v1981 = vpop.f32.mrb[0].mxu0
      %v1982 = vadd.f32 %v1880, %v1981
      %1983 = vmatprep.mubr.f32.mxu0 %v1756
      %1984 = vmatmul.mubr.f32.gmra.mrb[0].mxu0 %v1755
      %v1985 = vpop.f32.mrb[0].mxu0
      %v1986 = vadd.f32 %v1876, %v1985
      %v1987 = vpop.f32.mrb[0].mxu0
      %v1988 = vadd.f32 %v1880, %v1987
      %1989 = vmatprep.mubr.f32.mxu0 %v1758
      %1990 = vmatmul.mubr.f32.gmra.mrb[0].mxu0 %v1757
      %v1991 = vpop.f32.mrb[0].mxu0
      %v1992 = vadd.f32 %v1876, %v1991
      %v1993 = vpop.f32.mrb[0].mxu0
      %v1994 = vadd.f32 %v1880, %v1993
      %1995 = vmatprep.mubr.f32.mxu0 %v1760
      %1996 = vmatmul.mubr.f32.gmra.mrb[0].mxu0 %v1759
      %v1997 = vpop.f32.mrb[0].mxu0
      %v1998 = vadd.f32 %v1876, %v1997
      %v1999 = vpop.f32.mrb[0].mxu0
      %v2000 = vadd.f32 %v1880, %v1999
      %2001 = vmatprep.mubr.f32.mxu0 %v1762
      %2002 = vmatmul.mubr.f32.gmra.mrb[0].mxu0 %v1761
      %v2003 = vpop.f32.mrb[0].mxu0
      %v2004 = vadd.f32 %v1876, %v2003
      %v2005 = vpop.f32.mrb[0].mxu0
      %v2006 = vadd.f32 %v1880, %v2005
      %2007 = vmatprep.mubr.f32.mxu0 %v1764
      %2008 = vmatmul.mubr.f32.gmra.mrb[0].mxu0 %v1763
      %v2009 = vpop.f32.mrb[0].mxu0
      %v2010 = vadd.f32 %v1876, %v2009
      %v2011 = vpop.f32.mrb[0].mxu0
      %v2012 = vadd.f32 %v1880, %v2011
      %2013 = vmatprep.mubr.f32.mxu0 %v1766
      %2014 = vmatmul.mubr.f32.gmra.mrb[0].mxu0 %v1765
      %v2015 = vpop.f32.mrb[0].mxu0
      %v2016 = vadd.f32 %v1876, %v2015
      %v2017 = vpop.f32.mrb[0].mxu0
      %v2018 = vadd.f32 %v1880, %v2017
      %2019 = vmatprep.mubr.f32.mxu0 %v1768
      %2020 = vmatmul.mubr.f32.gmra.mrb[0].mxu0 %v1767
      %v2021 = vpop.f32.mrb[0].mxu0
      %v2022 = vadd.f32 %v1876, %v2021
      %v2023 = vpop.f32.mrb[0].mxu0
      %v2024 = vadd.f32 %v1880, %v2023
      %2025 = vmatprep.mubr.f32.mxu0 %v1770
      %2026 = vmatmul.mubr.f32.gmra.mrb[0].mxu0 %v1769
      %v2027 = vpop.f32.mrb[0].mxu0
      %v2028 = vadd.f32 %v1876, %v2027
      %v2029 = vpop.f32.mrb[0].mxu0
      %v2030 = vadd.f32 %v1880, %v2029
      %2031 = vmatprep.mubr.f32.mxu0 %v1772
      %2032 = vmatmul.mubr.f32.gmra.mrb[0].mxu0 %v1771
      %v2033 = vpop.f32.mrb[0].mxu0
      %v2034 = vadd.f32 %v1876, %v2033
      %v2035 = vpop.f32.mrb[0].mxu0
      %v2036 = vadd.f32 %v1880, %v2035
      %2037 = vmatprep.mubr.f32.mxu0 %v1774
      %2038 = vmatmul.mubr.f32.gmra.mrb[0].mxu0 %v1773
      %v2039 = vpop.f32.mrb[0].mxu0
      %v2040 = vadd.f32 %v1876, %v2039
      %v2041 = vpop.f32.mrb[0].mxu0
      %v2042 = vadd.f32 %v1880, %v2041
      %2043 = vmatprep.mubr.f32.mxu0 %v1776
      %2044 = vmatmul.mubr.f32.gmra.mrb[0].mxu0 %v1775
      %v2045 = vpop.f32.mrb[0].mxu0
      %v2046 = vadd.f32 %v1876, %v2045
      %v2047 = vpop.f32.mrb[0].mxu0
      %v2048 = vadd.f32 %v1880, %v2047
      %2049 = vmatprep.mubr.f32.mxu0 %v1778
      %2050 = vmatmul.mubr.f32.gmra.mrb[0].mxu0 %v1777
      %v2051 = vpop.f32.mrb[0].mxu0
      %v2052 = vadd.f32 %v1876, %v2051
      %v2053 = vpop.f32.mrb[0].mxu0
      %v2054 = vadd.f32 %v1880, %v2053
      %2055 = vmatprep.mubr.f32.mxu0 %v1780
      %2056 = vmatmul.mubr.f32.gmra.mrb[0].mxu0 %v1779
      %v2057 = vpop.f32.mrb[0].mxu0
      %v2058 = vadd.f32 %v1876, %v2057
      %v2059 = vpop.f32.mrb[0].mxu0
      %v2060 = vadd.f32 %v1880, %v2059
      %2061 = vmatprep.mubr.f32.mxu0 %v1782
      %2062 = vmatmul.mubr.f32.gmra.mrb[0].mxu0 %v1781
      %v2063 = vpop.f32.mrb[0].mxu0
      %v2064 = vadd.f32 %v1876, %v2063
      %v2065 = vpop.f32.mrb[0].mxu0
      %v2066 = vadd.f32 %v1880, %v2065
      %2067 = vmatprep.mubr.f32.mxu0 %v1784
      %2068 = vmatmul.mubr.f32.gmra.mrb[0].mxu0 %v1783
      %v2069 = vpop.f32.mrb[0].mxu0
      %v2070 = vadd.f32 %v1876, %v2069
      %v2071 = vpop.f32.mrb[0].mxu0
      %v2072 = vadd.f32 %v1880, %v2071
      %2073 = vmatprep.mubr.f32.mxu0 %v1786
      %2074 = vmatmul.mubr.f32.gmra.mrb[0].mxu0 %v1785
      %v2075 = vpop.f32.mrb[0].mxu0
      %v2076 = vadd.f32 %v1876, %v2075
      %v2077 = vpop.f32.mrb[0].mxu0
      %v2078 = vadd.f32 %v1880, %v2077
      %2079 = vmatprep.mubr.f32.mxu0 %v1788
      %2080 = vmatmul.mubr.f32.gmra.mrb[0].mxu0 %v1787
      %v2081 = vpop.f32.mrb[0].mxu0
      %v2082 = vadd.f32 %v1876, %v2081
      %v2083 = vpop.f32.mrb[0].mxu0
      %v2084 = vadd.f32 %v1880, %v2083
      %2085 = vmatprep.mubr.f32.mxu0 %v1790
      %2086 = vmatmul.mubr.f32.gmra.mrb[0].mxu0 %v1789
      %v2087 = vpop.f32.mrb[0].mxu0
      %v2088 = vadd.f32 %v1876, %v2087
      %v2089 = vpop.f32.mrb[0].mxu0
      %v2090 = vadd.f32 %v1880, %v2089
      %2091 = vmatprep.mubr.f32.mxu0 %v1792
      %2092 = vmatmul.mubr.f32.gmra.mrb[0].mxu0 %v1791
      %v2093 = vpop.f32.mrb[0].mxu0
      %v2094 = vadd.f32 %v1876, %v2093
      %v2095 = vpop.f32.mrb[0].mxu0
      %v2096 = vadd.f32 %v1880, %v2095
      %2097 = vmatprep.mubr.f32.mxu0 %v1794
      %2098 = vmatmul.mubr.f32.gmra.mrb[0].mxu0 %v1793
      %v2099 = vpop.f32.mrb[0].mxu0
      %v2100 = vadd.f32 %v1876, %v2099
      %v2101 = vpop.f32.mrb[0].mxu0
      %v2102 = vadd.f32 %v1880, %v2101
      %2103 = vmatprep.mubr.f32.mxu0 %v1796
      %2104 = vmatmul.mubr.f32.gmra.mrb[0].mxu0 %v1795
      %v2105 = vpop.f32.mrb[0].mxu0
      %v2106 = vadd.f32 %v1876, %v2105
      %v2107 = vpop.f32.mrb[0].mxu0
      %v2108 = vadd.f32 %v1880, %v2107
      %2109 = vmatprep.mubr.f32.mxu0 %v1798
      %2110 = vmatmul.mubr.f32.gmra.mrb[0].mxu0 %v1797
      %v2111 = vpop.f32.mrb[0].mxu0
      %v2112 = vadd.f32 %v1876, %v2111
      %v2113 = vpop.f32.mrb[0].mxu0
      %v2114 = vadd.f32 %v1880, %v2113
      %2115 = vmatprep.mubr.f32.mxu0 %v1800
      %2116 = vmatmul.mubr.f32.gmra.mrb[0].mxu0 %v1799
      %v2117 = vpop.f32.mrb[0].mxu0
      %v2118 = vadd.f32 %v1876, %v2117
      %v2119 = vpop.f32.mrb[0].mxu0
      %v2120 = vadd.f32 %v1880, %v2119
      %2121 = vmatprep.mubr.f32.mxu0 %v1802
      %2122 = vmatmul.mubr.f32.gmra.mrb[0].mxu0 %v1801
      %v2123 = vpop.f32.mrb[0].mxu0
      %v2124 = vadd.f32 %v1876, %v2123
      %v2125 = vpop.f32.mrb[0].mxu0
      %v2126 = vadd.f32 %v1880, %v2125
      %2127 = vmatprep.mubr.f32.mxu0 %v1804
      %2128 = vmatmul.mubr.f32.gmra.mrb[0].mxu0 %v1803
      %v2129 = vpop.f32.mrb[0].mxu0
      %v2130 = vadd.f32 %v1876, %v2129
      %v2131 = vpop.f32.mrb[0].mxu0
      %v2132 = vadd.f32 %v1880, %v2131
      %2133 = vmatprep.mubr.f32.mxu0 %v1806
      %2134 = vmatmul.mubr.f32.gmra.mrb[0].mxu0 %v1805
      %v2135 = vpop.f32.mrb[0].mxu0
      %v2136 = vadd.f32 %v1876, %v2135
      %v2137 = vpop.f32.mrb[0].mxu0
      %v2138 = vadd.f32 %v1880, %v2137
      %2139 = vdwg.mxu0
      %v2140 = vtanh.pop %v1950
      %v2141 = vtanh.pop %v1952
      %v2142 = vtanh.pop %v1956
      %v2143 = vtanh.pop %v1958
      %v2144 = vtanh.pop %v1962
      %v2145 = vtanh.pop %v1964
      %v2146 = vtanh.pop %v1968
      %v2147 = vtanh.pop %v1970
      %v2148 = vtanh.pop %v1974
      %v2149 = vtanh.pop %v1976
      %v2150 = vtanh.pop %v1980
      %v2151 = vtanh.pop %v1982
      %v2152 = vtanh.pop %v1986
      %v2153 = vtanh.pop %v1988
      %v2154 = vtanh.pop %v1992
      %v2155 = vtanh.pop %v1994
      %v2156 = vtanh.pop %v1998
      %v2157 = vtanh.pop %v2000
      %v2158 = vtanh.pop %v2004
      %v2159 = vtanh.pop %v2006
      %v2160 = vtanh.pop %v2010
      %v2161 = vtanh.pop %v2012
      %v2162 = vtanh.pop %v2016
      %v2163 = vtanh.pop %v2018
      %v2164 = vtanh.pop %v2022
      %v2165 = vtanh.pop %v2024
      %v2166 = vtanh.pop %v2028
      %v2167 = vtanh.pop %v2030
      %v2168 = vtanh.pop %v2034
      %v2169 = vtanh.pop %v2036
      %v2170 = vtanh.pop %v2040
      %v2171 = vtanh.pop %v2042
      %v2172 = vtanh.pop %v2046
      %v2173 = vtanh.pop %v2048
      %v2174 = vtanh.pop %v2052
      %v2175 = vtanh.pop %v2054
      %v2176 = vtanh.pop %v2058
      %v2177 = vtanh.pop %v2060
      %v2178 = vtanh.pop %v2064
      %v2179 = vtanh.pop %v2066
      %v2180 = vtanh.pop %v2070
      %v2181 = vtanh.pop %v2072
      %v2182 = vtanh.pop %v2076
      %v2183 = vtanh.pop %v2078
      %v2184 = vtanh.pop %v2082
      %v2185 = vtanh.pop %v2084
      %v2186 = vtanh.pop %v2088
      %v2187 = vtanh.pop %v2090
      %v2188 = vtanh.pop %v2094
      %v2189 = vtanh.pop %v2096
      %v2190 = vtanh.pop %v2100
      %v2191 = vtanh.pop %v2102
      %v2192 = vtanh.pop %v2106
      %v2193 = vtanh.pop %v2108
      %v2194 = vtanh.pop %v2112
      %v2195 = vtanh.pop %v2114
      %v2196 = vtanh.pop %v2118
      %v2197 = vtanh.pop %v2120
      %v2198 = vtanh.pop %v2124
      %v2199 = vtanh.pop %v2126
      %v2200 = vtanh.pop %v2130
      %v2201 = vtanh.pop %v2132
      %v2202 = vtanh.pop %v2136
      %v2203 = vtanh.pop %v2138
      %v2204 = vld [vmem:[%s9] sm:$0x3]
      %v2206 = vlaneseq
      %v2207 = vshrl.u32 %v2206, 7
      %v2208 = vsub.s32 0, %v2207
      %v2209 = vrot.slane %v2204, %v2208
      %v2210 = vlaneseq
      %v2211 = vshrl.u32 %v2210, 7
      %v2212 = vsub.s32 1, %v2211
      %v2213 = vrot.slane %v2204, %v2212
      %v2216 = vmul.f32 %v2140, %v2209
      %v2217 = vmul.f32 %v2141, %v2213
      %v2218 = vmul.f32 %v2142, %v2209
      %v2219 = vmul.f32 %v2143, %v2213
      %v2220 = vmul.f32 %v2144, %v2209
      %v2221 = vmul.f32 %v2145, %v2213
      %v2222 = vmul.f32 %v2146, %v2209
      %v2223 = vmul.f32 %v2147, %v2213
      %v2224 = vmul.f32 %v2148, %v2209
      %v2225 = vmul.f32 %v2149, %v2213
      %v2226 = vmul.f32 %v2150, %v2209
      %v2227 = vmul.f32 %v2151, %v2213
      %v2228 = vmul.f32 %v2152, %v2209
      %v2229 = vmul.f32 %v2153, %v2213
      %v2230 = vmul.f32 %v2154, %v2209
      %v2231 = vmul.f32 %v2155, %v2213
      %v2232 = vmul.f32 %v2156, %v2209
      %v2233 = vmul.f32 %v2157, %v2213
      %v2234 = vmul.f32 %v2158, %v2209
      %v2235 = vmul.f32 %v2159, %v2213
      %v2236 = vmul.f32 %v2160, %v2209
      %v2237 = vmul.f32 %v2161, %v2213
      %v2238 = vmul.f32 %v2162, %v2209
      %v2239 = vmul.f32 %v2163, %v2213
      %v2240 = vmul.f32 %v2164, %v2209
      %v2241 = vmul.f32 %v2165, %v2213
      %v2242 = vmul.f32 %v2166, %v2209
      %v2243 = vmul.f32 %v2167, %v2213
      %v2244 = vmul.f32 %v2168, %v2209
      %v2245 = vmul.f32 %v2169, %v2213
      %v2246 = vmul.f32 %v2170, %v2209
      %v2247 = vmul.f32 %v2171, %v2213
      %v2248 = vmul.f32 %v2172, %v2209
      %v2249 = vmul.f32 %v2173, %v2213
      %v2250 = vmul.f32 %v2174, %v2209
      %v2251 = vmul.f32 %v2175, %v2213
      %v2252 = vmul.f32 %v2176, %v2209
      %v2253 = vmul.f32 %v2177, %v2213
      %v2254 = vmul.f32 %v2178, %v2209
      %v2255 = vmul.f32 %v2179, %v2213
      %v2256 = vmul.f32 %v2180, %v2209
      %v2257 = vmul.f32 %v2181, %v2213
      %v2258 = vmul.f32 %v2182, %v2209
      %v2259 = vmul.f32 %v2183, %v2213
      %v2260 = vmul.f32 %v2184, %v2209
      %v2261 = vmul.f32 %v2185, %v2213
      %v2262 = vmul.f32 %v2186, %v2209
      %v2263 = vmul.f32 %v2187, %v2213
      %v2264 = vmul.f32 %v2188, %v2209
      %v2265 = vmul.f32 %v2189, %v2213
      %v2266 = vmul.f32 %v2190, %v2209
      %v2267 = vmul.f32 %v2191, %v2213
      %v2268 = vmul.f32 %v2192, %v2209
      %v2269 = vmul.f32 %v2193, %v2213
      %v2270 = vmul.f32 %v2194, %v2209
      %v2271 = vmul.f32 %v2195, %v2213
      %v2272 = vmul.f32 %v2196, %v2209
      %v2273 = vmul.f32 %v2197, %v2213
      %v2274 = vmul.f32 %v2198, %v2209
      %v2275 = vmul.f32 %v2199, %v2213
      %v2276 = vmul.f32 %v2200, %v2209
      %v2277 = vmul.f32 %v2201, %v2213
      %v2278 = vmul.f32 %v2202, %v2209
      %v2279 = vmul.f32 %v2203, %v2213
      %v2280 = vadd.f32 %v2216, %v2217
      %2281 = vadd.xlane.f32.xlu0 %v2280
      %v2282 = vpop.xlane.xlu0 %2281
      %v2283 = vadd.f32 %v2218, %v2219
      %2284 = vadd.xlane.f32.xlu0 %v2283
      %v2285 = vpop.xlane.xlu0 %2284
      %v2286 = vadd.f32 %v2220, %v2221
      %2287 = vadd.xlane.f32.xlu0 %v2286
      %v2288 = vpop.xlane.xlu0 %2287
      %v2289 = vadd.f32 %v2222, %v2223
      %2290 = vadd.xlane.f32.xlu0 %v2289
      %v2291 = vpop.xlane.xlu0 %2290
      %v2292 = vadd.f32 %v2224, %v2225
      %2293 = vadd.xlane.f32.xlu0 %v2292
      %v2294 = vpop.xlane.xlu0 %2293
      %v2295 = vadd.f32 %v2226, %v2227
      %2296 = vadd.xlane.f32.xlu0 %v2295
      %v2297 = vpop.xlane.xlu0 %2296
      %v2298 = vadd.f32 %v2228, %v2229
      %2299 = vadd.xlane.f32.xlu0 %v2298
      %v2300 = vpop.xlane.xlu0 %2299
      %v2301 = vadd.f32 %v2230, %v2231
      %2302 = vadd.xlane.f32.xlu0 %v2301
      %v2303 = vpop.xlane.xlu0 %2302
      %v2304 = vadd.f32 %v2232, %v2233
      %2305 = vadd.xlane.f32.xlu0 %v2304
      %v2306 = vpop.xlane.xlu0 %2305
      %v2307 = vadd.f32 %v2234, %v2235
      %2308 = vadd.xlane.f32.xlu0 %v2307
      %v2309 = vpop.xlane.xlu0 %2308
      %v2310 = vadd.f32 %v2236, %v2237
      %2311 = vadd.xlane.f32.xlu0 %v2310
      %v2312 = vpop.xlane.xlu0 %2311
      %v2313 = vadd.f32 %v2238, %v2239
      %2314 = vadd.xlane.f32.xlu0 %v2313
      %v2315 = vpop.xlane.xlu0 %2314
      %v2316 = vadd.f32 %v2240, %v2241
      %2317 = vadd.xlane.f32.xlu0 %v2316
      %v2318 = vpop.xlane.xlu0 %2317
      %v2319 = vadd.f32 %v2242, %v2243
      %2320 = vadd.xlane.f32.xlu0 %v2319
      %v2321 = vpop.xlane.xlu0 %2320
      %v2322 = vadd.f32 %v2244, %v2245
      %2323 = vadd.xlane.f32.xlu0 %v2322
      %v2324 = vpop.xlane.xlu0 %2323
      %v2325 = vadd.f32 %v2246, %v2247
      %2326 = vadd.xlane.f32.xlu0 %v2325
      %v2327 = vpop.xlane.xlu0 %2326
      %v2328 = vadd.f32 %v2248, %v2249
      %2329 = vadd.xlane.f32.xlu0 %v2328
      %v2330 = vpop.xlane.xlu0 %2329
      %v2331 = vadd.f32 %v2250, %v2251
      %2332 = vadd.xlane.f32.xlu0 %v2331
      %v2333 = vpop.xlane.xlu0 %2332
      %v2334 = vadd.f32 %v2252, %v2253
      %2335 = vadd.xlane.f32.xlu0 %v2334
      %v2336 = vpop.xlane.xlu0 %2335
      %v2337 = vadd.f32 %v2254, %v2255
      %2338 = vadd.xlane.f32.xlu0 %v2337
      %v2339 = vpop.xlane.xlu0 %2338
      %v2340 = vadd.f32 %v2256, %v2257
      %2341 = vadd.xlane.f32.xlu0 %v2340
      %v2342 = vpop.xlane.xlu0 %2341
      %v2343 = vadd.f32 %v2258, %v2259
      %2344 = vadd.xlane.f32.xlu0 %v2343
      %v2345 = vpop.xlane.xlu0 %2344
      %v2346 = vadd.f32 %v2260, %v2261
      %2347 = vadd.xlane.f32.xlu0 %v2346
      %v2348 = vpop.xlane.xlu0 %2347
      %v2349 = vadd.f32 %v2262, %v2263
      %2350 = vadd.xlane.f32.xlu0 %v2349
      %v2351 = vpop.xlane.xlu0 %2350
      %v2352 = vadd.f32 %v2264, %v2265
      %2353 = vadd.xlane.f32.xlu0 %v2352
      %v2354 = vpop.xlane.xlu0 %2353
      %v2355 = vadd.f32 %v2266, %v2267
      %2356 = vadd.xlane.f32.xlu0 %v2355
      %v2357 = vpop.xlane.xlu0 %2356
      %v2358 = vadd.f32 %v2268, %v2269
      %2359 = vadd.xlane.f32.xlu0 %v2358
      %v2360 = vpop.xlane.xlu0 %2359
      %v2361 = vadd.f32 %v2270, %v2271
      %2362 = vadd.xlane.f32.xlu0 %v2361
      %v2363 = vpop.xlane.xlu0 %2362
      %v2364 = vadd.f32 %v2272, %v2273
      %2365 = vadd.xlane.f32.xlu0 %v2364
      %v2366 = vpop.xlane.xlu0 %2365
      %v2367 = vadd.f32 %v2274, %v2275
      %2368 = vadd.xlane.f32.xlu0 %v2367
      %v2369 = vpop.xlane.xlu0 %2368
      %v2370 = vadd.f32 %v2276, %v2277
      %2371 = vadd.xlane.f32.xlu0 %v2370
      %v2372 = vpop.xlane.xlu0 %2371
      %v2373 = vadd.f32 %v2278, %v2279
      %2374 = vadd.xlane.f32.xlu0 %v2373
      %v2375 = vpop.xlane.xlu0 %2374
      %v2376 = vld [vmem:[#allocation2] sm:$0x1]
      %v2378 = vlaneseq
      %v2379 = vshrl.u32 %v2378, 7
      %v2380 = vsub.s32 0, %v2379
      %v2381 = vrot.slane %v2376, %v2380
      %v2383 = vadd.f32 %v2282, %v2381
      %v2384 = vadd.f32 %v2285, %v2381
      %v2385 = vadd.f32 %v2288, %v2381
      %v2386 = vadd.f32 %v2291, %v2381
      %v2387 = vadd.f32 %v2294, %v2381
      %v2388 = vadd.f32 %v2297, %v2381
      %v2389 = vadd.f32 %v2300, %v2381
      %v2390 = vadd.f32 %v2303, %v2381
      %v2391 = vadd.f32 %v2306, %v2381
      %v2392 = vadd.f32 %v2309, %v2381
      %v2393 = vadd.f32 %v2312, %v2381
      %v2394 = vadd.f32 %v2315, %v2381
      %v2395 = vadd.f32 %v2318, %v2381
      %v2396 = vadd.f32 %v2321, %v2381
      %v2397 = vadd.f32 %v2324, %v2381
      %v2398 = vadd.f32 %v2327, %v2381
      %v2399 = vadd.f32 %v2330, %v2381
      %v2400 = vadd.f32 %v2333, %v2381
      %v2401 = vadd.f32 %v2336, %v2381
      %v2402 = vadd.f32 %v2339, %v2381
      %v2403 = vadd.f32 %v2342, %v2381
      %v2404 = vadd.f32 %v2345, %v2381
      %v2405 = vadd.f32 %v2348, %v2381
      %v2406 = vadd.f32 %v2351, %v2381
      %v2407 = vadd.f32 %v2354, %v2381
      %v2408 = vadd.f32 %v2357, %v2381
      %v2409 = vadd.f32 %v2360, %v2381
      %v2410 = vadd.f32 %v2363, %v2381
      %v2411 = vadd.f32 %v2366, %v2381
      %v2412 = vadd.f32 %v2369, %v2381
      %v2413 = vadd.f32 %v2372, %v2381
      %v2414 = vadd.f32 %v2375, %v2381
      %vm2415 = vcmask 7168
      %2416 = vst.msk [vmem:[%s434] sm:$0xff] %vm2415, %v2383
      %2417 = vst.msk [vmem:[%s434 + $0x8] sm:$0xff] %vm2415, %v2384
      %2418 = vst.msk [vmem:[%s434 + $0x10] sm:$0xff] %vm2415, %v2385
      %2419 = vst.msk [vmem:[%s434 + $0x18] sm:$0xff] %vm2415, %v2386
      %2420 = vst.msk [vmem:[%s434 + $0x20] sm:$0xff] %vm2415, %v2387
      %2421 = vst.msk [vmem:[%s434 + $0x28] sm:$0xff] %vm2415, %v2388
      %2422 = vst.msk [vmem:[%s434 + $0x30] sm:$0xff] %vm2415, %v2389
      %2423 = vst.msk [vmem:[%s434 + $0x38] sm:$0xff] %vm2415, %v2390
      %2424 = vst.msk [vmem:[%s434 + $0x40] sm:$0xff] %vm2415, %v2391
      %2425 = vst.msk [vmem:[%s434 + $0x48] sm:$0xff] %vm2415, %v2392
      %2426 = vst.msk [vmem:[%s434 + $0x50] sm:$0xff] %vm2415, %v2393
      %2427 = vst.msk [vmem:[%s434 + $0x58] sm:$0xff] %vm2415, %v2394
      %2428 = vst.msk [vmem:[%s434 + $0x60] sm:$0xff] %vm2415, %v2395
      %2429 = vst.msk [vmem:[%s434 + $0x68] sm:$0xff] %vm2415, %v2396
      %2430 = vst.msk [vmem:[%s434 + $0x70] sm:$0xff] %vm2415, %v2397
      %2431 = vst.msk [vmem:[%s434 + $0x78] sm:$0xff] %vm2415, %v2398
      %2432 = vst.msk [vmem:[%s434 + $0x80] sm:$0xff] %vm2415, %v2399
      %2433 = vst.msk [vmem:[%s434 + $0x88] sm:$0xff] %vm2415, %v2400
      %2434 = vst.msk [vmem:[%s434 + $0x90] sm:$0xff] %vm2415, %v2401
      %2435 = vst.msk [vmem:[%s434 + $0x98] sm:$0xff] %vm2415, %v2402
      %2436 = vst.msk [vmem:[%s434 + $0xa0] sm:$0xff] %vm2415, %v2403
      %2437 = vst.msk [vmem:[%s434 + $0xa8] sm:$0xff] %vm2415, %v2404
      %2438 = vst.msk [vmem:[%s434 + $0xb0] sm:$0xff] %vm2415, %v2405
      %2439 = vst.msk [vmem:[%s434 + $0xb8] sm:$0xff] %vm2415, %v2406
      %2440 = vst.msk [vmem:[%s434 + $0xc0] sm:$0xff] %vm2415, %v2407
      %2441 = vst.msk [vmem:[%s434 + $0xc8] sm:$0xff] %vm2415, %v2408
      %2442 = vst.msk [vmem:[%s434 + $0xd0] sm:$0xff] %vm2415, %v2409
      %2443 = vst.msk [vmem:[%s434 + $0xd8] sm:$0xff] %vm2415, %v2410
      %2444 = vst.msk [vmem:[%s434 + $0xe0] sm:$0xff] %vm2415, %v2411
      %2445 = vst.msk [vmem:[%s434 + $0xe8] sm:$0xff] %vm2415, %v2412
      %2446 = vst.msk [vmem:[%s434 + $0xf0] sm:$0xff] %vm2415, %v2413
      %2447 = vst.msk [vmem:[%s434 + $0xf8] sm:$0xff] %vm2415, %v2414
      %s2448 = smul.u32 32, %s24
      %p2449 = scmp.lt.s32.totalorder %s2448, 63
      %s2450 = scalar_select %p2449, %s2448, 63
      %s2451 = smul.addr %s2450, 8
      %s2452 = scalar_lea.vmem %s11, %s2451
      // Predicated region
      $region65: #{tpu_custom_call.1} parent=63 // pred_check
        %p2453 = pneg %p288
      $region66: #{tpu_custom_call.1} parent=63 // pred_check_branch
        %2455 = sbr.rel (%p2453) target = $region68
      $region67: #{tpu_custom_call.1} parent=63 // pred_region
        %s2456 = smul.u32 32, %s24
      $region68: #{tpu_custom_call.1} parent=63 // pred_fallthru
        _
    $region64: #{tpu_custom_call.1} parent=5 // pred_fallthru
      _
    %p2457 = scmp.le.s32.totalorder 2, %s19
    // Predicated region
    $region69: #{tpu_custom_call.1} parent=5 // pred_check
      %p2458 = pneg %p2457
    $region70: #{tpu_custom_call.1} parent=5 // pred_check_branch
      %2460 = sbr.rel (%p2458) target = $region72
    $region71: #{tpu_custom_call.1} parent=5 // pred_region
      %s2461 = ssub.s32 %s19, 2
      // Predicated region
      $region73: #{tpu_custom_call.1} parent=71 // pred_check
        %p2462 = pneg %p294
      $region74: #{tpu_custom_call.1} parent=71 // pred_check_branch
        %2464 = sbr.rel (%p2462) target = $region76
      $region75: #{tpu_custom_call.1} parent=71 // pred_region
        %s2465 = smul.u32 32, %s25
        %p2466 = scmp.lt.s32.totalorder %s2465, 63
        %s2467 = scalar_select %p2466, %s2465, 63
        %s2468 = smul.addr %s2467, 8
        %s2469 = scalar_lea.vmem %s11, %s2468
      $region76: #{tpu_custom_call.1} parent=71 // pred_fallthru
        _
    $region72: #{tpu_custom_call.1} parent=5 // pred_fallthru
      _
  $region6: #{tpu_custom_call.1} parent=0 // loop_footer
    %s23 = sadd.s32 1, %s19
  $region7: #{tpu_custom_call.1} parent=0 // loop_footer_branch
    %18 = sbr.rel target = $region3
  $region8: #{tpu_custom_call.1} parent=0 // loop_exit
    _

</llo_original>
